<compile_context>
chip_gen: v5e
topology: v5e:2x2
jax: 0.10.0
libtpu: 0.0.40
codegen_flags: <defaults>
</compile_context>

<pallas_src>
import jax
import jax.numpy as jnp
import numpy as np
from jax import lax
from jax.experimental import pallas as pl
from jax.experimental.pallas import tpu as pltpu

# ---- stand-ins for FLAGS --------------------------------------------------
NUM_CLASSES = 8            # FLAGS.num_classes
MAX_WORDS = 8              # FLAGS.max_words
IDIM = NUM_CLASSES + 2     # 10
ODIM = 128
HID = ODIM // 2            # 64, per-direction hidden size
BB = 8                     # batch block = sublane width
# FLAGS.rnn_type = 'LSTM', FLAGS.rnn_layers = 1, FLAGS.rnn_dropout unused (1 layer)


# ---------------------------------------------------------------------------
# Pallas kernel: fused input projection + merged bidirectional LSTM recurrence
# + final dense(128 -> 1).
# ---------------------------------------------------------------------------
def bilstm_dense_kernel(
    x_ref,       # (seq, BB, 2*idim)  [x(t) | x(seq-1-t)] per row block
    wih_ref,     # (2*idim, 8H)       merged input weights (gate-interleaved)
    whh_ref,     # (2H, 8H)           block-diagonal recurrent weights
    b_ref,       # (1, 8H)            merged biases (b_ih + b_hh, interleaved)
    wd2_ref,     # (2H, 2)            col0=[wd_f;0], col1=[0;wd_b]
    bd_ref,      # (1, 1)             dense bias
    out_ref,     # (seq, BB)          output (time-major; transposed in wrapper)
    xg_scr,      # (seq, BB, 8H)      scratch: fused input projections
    h_scr,       # (seq, BB, 2H)      scratch: h_scr[t]    = [h_f(t) | h_b(seq-1-t)]
    hrev_scr,    # (seq, BB, 2H)      scratch: hrev_scr[t] = [h_f(seq-1-t) | h_b(t)]
):
    seq, bsp, _ = x_ref.shape
    H2 = h_scr.shape[-1]                       # 128 = both directions

    # One fused MXU pass: input projections for BOTH directions, ALL timesteps.
    xg_scr[...] = jnp.einsum(
        'tbi,ig->tbg', x_ref[...], wih_ref[...],
        preferred_element_type=jnp.float32) + b_ref[...]

    whh = whh_ref[...]                         # hoisted: loaded once

    h = jnp.zeros((bsp, H2), jnp.float32)      # [h_f | h_b]
    c = jnp.zeros((bsp, H2), jnp.float32)      # [c_f | c_b]

    # Fully unrolled time loop (seq is small & static) -> static indices,
    # one (bsp,128)@(128,512) matmul per step for both directions.
    for i in range(seq):
        gates = xg_scr[i] + jnp.dot(h, whh, preferred_element_type=jnp.float32)
        # Gate layout: each 128-lane block is [fwd(64) | bwd(64)] of one gate.
        ig = jax.nn.sigmoid(gates[:, 0 * H2:1 * H2])
        fg = jax.nn.sigmoid(gates[:, 1 * H2:2 * H2])
        gg = jnp.tanh(gates[:, 2 * H2:3 * H2])
        og = jax.nn.sigmoid(gates[:, 3 * H2:4 * H2])
        c = fg * c + ig * gg
        h = og * jnp.tanh(c)
        h_scr[i] = h
        hrev_scr[seq - 1 - i] = h

    # Fused dense(128 -> 1): wd2 col0 picks the forward half, col1 the backward
    # half; hrev_scr has the backward hidden already at its natural time index,
    # so no in-kernel flip/transpose is needed.
    dense_f = jnp.einsum('tbh,hk->tbk', h_scr[...], wd2_ref[...],
                         preferred_element_type=jnp.float32)[..., 0]
    dense_b = jnp.einsum('tbh,hk->tbk', hrev_scr[...], wd2_ref[...],
                         preferred_element_type=jnp.float32)[..., 1]
    out_ref[...] = dense_f + dense_b + bd_ref[0, 0]


# ---------------------------------------------------------------------------
# Wrapper: layout plumbing in XLA (reshape/concat/transpose/pad), then one
# pallas_call gridded over batch blocks.
# ---------------------------------------------------------------------------
def model_forward(token_logits, start_logits, params):
    bs = token_logits.shape[0]
    tok = token_logits.reshape(bs, MAX_WORDS, NUM_CLASSES)
    st = start_logits.reshape(bs, MAX_WORDS, 2)
    x = jnp.concatenate([tok, st], axis=-1).astype(jnp.float32)   # (bs, seq, idim)

    # Pad batch to a multiple of the 8-wide sublane tile.
    bs_pad = ((bs + BB - 1) // BB) * BB
    if bs_pad != bs:
        x = jnp.pad(x, ((0, bs_pad - bs), (0, 0), (0, 0)))

    # Time-major; fuse forward input and time-reversed input along features so
    # the kernel does a single input projection for both directions.
    xt = jnp.transpose(x, (1, 0, 2))                    # (seq, bs_pad, idim)
    x_comb = jnp.concatenate([xt, xt[::-1]], axis=-1)   # (seq, bs_pad, 2*idim)

    nb = bs_pad // BB
    seq = MAX_WORDS

    out3 = pl.pallas_call(
        bilstm_dense_kernel,
        out_shape=jax.ShapeDtypeStruct((nb, seq, BB), jnp.float32),
        grid=(nb,),
        in_specs=[
            pl.BlockSpec((seq, BB, 2 * IDIM), lambda b: (0, b, 0)),
            pl.BlockSpec((2 * IDIM, 8 * HID), lambda b: (0, 0)),
            pl.BlockSpec((2 * HID, 8 * HID), lambda b: (0, 0)),
            pl.BlockSpec((1, 8 * HID), lambda b: (0, 0)),
            pl.BlockSpec((2 * HID, 2), lambda b: (0, 0)),
            pl.BlockSpec((1, 1), lambda b: (0, 0)),
        ],
        out_specs=pl.BlockSpec((None, seq, BB), lambda b: (b, 0, 0)),
        scratch_shapes=[
            pltpu.VMEM((seq, BB, 8 * HID), jnp.float32),
            pltpu.VMEM((seq, BB, 2 * HID), jnp.float32),
            pltpu.VMEM((seq, BB, 2 * HID), jnp.float32),
        ],
        compiler_params=pltpu.CompilerParams(
            dimension_semantics=("parallel",)),
    )(x_comb, params['wih_comb'], params['whh_comb'], params['b_comb'],
      params['wd2'], params['bd'])

    # (nb, seq, BB) -> (bs, seq): pure layout plumbing in XLA.
    out = jnp.transpose(out3, (0, 2, 1)).reshape(bs_pad, seq)
    return out[:bs]


# ---------------------------------------------------------------------------
# Build merged kernel weights from raw PyTorch-layout LSTM/Linear weights.
# Gate-interleaved column layout: [i_f i_b | f_f f_b | g_f g_b | o_f o_b],
# each sub-block 64 wide -> every gate occupies a full 128-lane block.
# ---------------------------------------------------------------------------
def prepare_params(raw):
    H = HID
    wih_f_t = raw['wih_f'].T          # (idim, 4H), gate order i,f,g,o
    wih_b_t = raw['wih_b'].T
    whh_f_t = raw['whh_f'].T          # (H, 4H)
    whh_b_t = raw['whh_b'].T
    bf = raw['bih_f'] + raw['bhh_f']  # (4H,)
    bb = raw['bih_b'] + raw['bhh_b']

    zi = jnp.zeros((IDIM, H), jnp.float32)
    zh = jnp.zeros((H, H), jnp.float32)

    wih_cols, whh_cols, b_cols = [], [], []
    for k in range(4):                           # PyTorch gate order i, f, g, o
        sl = slice(k * H, (k + 1) * H)
        # forward-direction columns: fed by forward input rows / h_f rows only
        wih_cols.append(jnp.concatenate([wih_f_t[:, sl], zi], axis=0))
        whh_cols.append(jnp.concatenate([whh_f_t[:, sl], zh], axis=0))
        b_cols.append(bf[sl])
        # backward-direction columns: fed by backward input rows / h_b rows only
        wih_cols.append(jnp.concatenate([zi, wih_b_t[:, sl]], axis=0))
        whh_cols.append(jnp.concatenate([zh, whh_b_t[:, sl]], axis=0))
        b_cols.append(bb[sl])

    wih_comb = jnp.concatenate(wih_cols, axis=1)    # (2*idim, 8H)
    whh_comb = jnp.concatenate(whh_cols, axis=1)    # (2H, 8H) block-diagonal
    b_comb = jnp.concatenate(b_cols)[None, :]       # (1, 8H)

    wd = raw['wd'][0]                               # (2H,)
    zv = jnp.zeros((H,), jnp.float32)
    wd2 = jnp.stack([jnp.concatenate([wd[:H], zv]),
                     jnp.concatenate([zv, wd[H:]])], axis=1)   # (2H, 2)

    return dict(wih_comb=wih_comb, whh_comb=whh_comb, b_comb=b_comb,
                wd2=wd2, bd=raw['bd'])


# ---------------------------------------------------------------------------
# Deterministic parameter init (PyTorch-style uniform(-1/sqrt(H), 1/sqrt(H))).
# ---------------------------------------------------------------------------
def init_params(key):
    kb = 1.0 / np.sqrt(HID)
    keys = jax.random.split(key, 10)

    def u(kk, shape, bound):
        return jax.random.uniform(kk, shape, jnp.float32, -bound, bound)

    wih_f = u(keys[0], (4 * HID, IDIM), kb)
    whh_f = u(keys[1], (4 * HID, HID), kb)
    bih_f = u(keys[2], (4 * HID,), kb)
    bhh_f = u(keys[3], (4 * HID,), kb)
    wih_b = u(keys[4], (4 * HID, IDIM), kb)
    whh_b = u(keys[5], (4 * HID, HID), kb)
    bih_b = u(keys[6], (4 * HID,), kb)
    bhh_b = u(keys[7], (4 * HID,), kb)
    kd = 1.0 / np.sqrt(ODIM)
    wd = u(keys[8], (1, ODIM), kd)
    bd = u(keys[9], (1, 1), kd)

    raw = dict(
        wih_f=wih_f, whh_f=whh_f, bih_f=bih_f, bhh_f=bhh_f,
        wih_b=wih_b, whh_b=whh_b, bih_b=bih_b, bhh_b=bhh_b,
        wd=wd, bd=bd,
    )
    return prepare_params(raw), raw


# ---------------------------------------------------------------------------
# Pure-JAX reference (mirrors torch.nn.LSTM + Linear semantics).
# ---------------------------------------------------------------------------
def reference_forward(token_logits, start_logits, raw):
    bs = token_logits.shape[0]
    tok = token_logits.reshape(bs, MAX_WORDS, NUM_CLASSES)
    st = start_logits.reshape(bs, MAX_WORDS, 2)
    x = jnp.concatenate([tok, st], -1).astype(jnp.float32)
    H = HID

    def run_dir(wih, whh, bih, bhh, reverse):
        xs = x[:, ::-1, :] if reverse else x

        def step(carry, xt):
            h, c = carry
            gates = xt @ wih.T + bih + h @ whh.T + bhh
            i = jax.nn.sigmoid(gates[:, :H])
            f = jax.nn.sigmoid(gates[:, H:2 * H])
            g = jnp.tanh(gates[:, 2 * H:3 * H])
            o = jax.nn.sigmoid(gates[:, 3 * H:])
            c = f * c + i * g
            h = o * jnp.tanh(c)
            return (h, c), h

        init = (jnp.zeros((bs, H), jnp.float32), jnp.zeros((bs, H), jnp.float32))
        _, hs = lax.scan(step, init, jnp.transpose(xs, (1, 0, 2)))
        hs = jnp.transpose(hs, (1, 0, 2))  # (bs, seq, H)
        return hs[:, ::-1, :] if reverse else hs

    hf = run_dir(raw['wih_f'], raw['whh_f'], raw['bih_f'], raw['bhh_f'], False)
    hb = run_dir(raw['wih_b'], raw['whh_b'], raw['bih_b'], raw['bhh_b'], True)
    hcat = jnp.concatenate([hf, hb], -1)          # (bs, seq, 2H)
    return hcat @ raw['wd'][0] + raw['bd'][0, 0]  # (bs, seq)


if __name__ == "__main__":
    # TODO(synk): DeBERTa backbone exists in __init__ but is unused in forward();
    # token_logits / start_logits are taken as direct inputs.
    key = jax.random.PRNGKey(0)
    kp, k1, k2 = jax.random.split(key, 3)
    params, raw = init_params(kp)

    bs = 2
    token_logits = jax.random.normal(k1, (bs, MAX_WORDS * NUM_CLASSES), jnp.float32)
    start_logits = jax.random.normal(k2, (bs, MAX_WORDS * 2), jnp.float32)

    out = model_forward(token_logits, start_logits, params)
    out = jax.block_until_ready(out)

    ref = reference_forward(token_logits, start_logits, raw)
    np.testing.assert_allclose(np.asarray(out), np.asarray(ref), rtol=1e-4, atol=1e-4)

    print("KERNEL_OK")
</pallas_src>

<mosaic_0001>
module attributes {stable_mosaic.version = 11 : i64} {
  func.func @bilstm_dense_kernel(%arg0: i32, %arg1: memref<8x8x20xf32, #tpu.memory_space<vmem>>, %arg2: memref<20x512xf32, #tpu.memory_space<vmem>>, %arg3: memref<128x512xf32, #tpu.memory_space<vmem>>, %arg4: memref<1x512xf32, #tpu.memory_space<vmem>>, %arg5: memref<128x2xf32, #tpu.memory_space<vmem>>, %arg6: memref<1x1xf32, #tpu.memory_space<vmem>>, %arg7: memref<1x8x8xf32, #tpu.memory_space<vmem>>, %arg8: memref<8x8x512xf32, #tpu.memory_space<vmem>>, %arg9: memref<8x8x128xf32, #tpu.memory_space<vmem>>, %arg10: memref<8x8x128xf32, #tpu.memory_space<vmem>>) attributes {dimension_semantics = [#tpu.dimension_semantics<parallel>], iteration_bounds = array<i64: 1>, scalar_prefetch = 0 : i64, scratch_operands = 3 : i64, tpu.core_type = #tpu.core_type<tc>, window_params = [{transform_indices = @transform_0, window_bounds = array<i64: 8, 8, 20>}, {pipeline_mode = #tpu.pipeline_mode<synchronous>, transform_indices = @transform_1, window_bounds = array<i64: 20, 512>}, {pipeline_mode = #tpu.pipeline_mode<synchronous>, transform_indices = @transform_2, window_bounds = array<i64: 128, 512>}, {pipeline_mode = #tpu.pipeline_mode<synchronous>, transform_indices = @transform_3, window_bounds = array<i64: 1, 512>}, {pipeline_mode = #tpu.pipeline_mode<synchronous>, transform_indices = @transform_4, window_bounds = array<i64: 128, 2>}, {pipeline_mode = #tpu.pipeline_mode<synchronous>, transform_indices = @transform_5, window_bounds = array<i64: 1, 1>}, {transform_indices = @transform_6, window_bounds = array<i64: 1, 8, 8>}]} {
    %c0 = arith.constant 0 : index
    %c0_0 = arith.constant 0 : index
    %c0_1 = arith.constant 0 : index
    %0 = vector.load %arg1[%c0, %c0_0, %c0_1] : memref<8x8x20xf32, #tpu.memory_space<vmem>>, vector<8x8x20xf32>
    %c0_2 = arith.constant 0 : index
    %c0_3 = arith.constant 0 : index
    %1 = vector.load %arg2[%c0_2, %c0_3] : memref<20x512xf32, #tpu.memory_space<vmem>>, vector<20x512xf32>
    "tpu.trace_start"() <{level = 10 : i32, message = "tbi,ig->tbg"}> : () -> ()
    %cst = arith.constant dense<0.000000e+00> : vector<8x8x512xf32>
    %2 = tpu.matmul %0, %1, %cst {dimension_numbers = #tpu.dot_dimension_numbers<[2], [0], [0, 1], [1], [0, 0, 0, 1, 1, 1], [], []>} : vector<8x8x20xf32>, vector<20x512xf32>, vector<8x8x512xf32> -> vector<8x8x512xf32>
    "tpu.trace_stop"() : () -> ()
    %c0_4 = arith.constant 0 : index
    %c0_5 = arith.constant 0 : index
    %3 = vector.load %arg4[%c0_4, %c0_5] : memref<1x512xf32, #tpu.memory_space<vmem>>, vector<1x512xf32>
    %4 = vector.shape_cast %3 : vector<1x512xf32> to vector<1x1x512xf32>
    %5 = vector.broadcast %4 : vector<1x1x512xf32> to vector<8x8x512xf32>
    %6 = arith.addf %2, %5 : vector<8x8x512xf32>
    %c0_6 = arith.constant 0 : index
    %c0_7 = arith.constant 0 : index
    %c0_8 = arith.constant 0 : index
    %7 = vector.load %arg8[%c0_6, %c0_7, %c0_8] : memref<8x8x512xf32, #tpu.memory_space<vmem>>, vector<8x8x512xf32>
    tpu.vector_store %arg8[%c0_6, %c0_7, %c0_8], %6 {strides = array<i32>} : memref<8x8x512xf32, #tpu.memory_space<vmem>>, vector<8x8x512xf32>,
    %c0_9 = arith.constant 0 : index
    %c0_10 = arith.constant 0 : index
    %8 = vector.load %arg3[%c0_9, %c0_10] : memref<128x512xf32, #tpu.memory_space<vmem>>, vector<128x512xf32>
    %cst_11 = arith.constant 0.000000e+00 : f32
    %9 = vector.broadcast %cst_11 : f32 to vector<8x128xf32>
    %cst_12 = arith.constant 0.000000e+00 : f32
    %10 = vector.broadcast %cst_12 : f32 to vector<8x128xf32>
    %c0_13 = arith.constant 0 : index
    %c0_14 = arith.constant 0 : index
    %c0_15 = arith.constant 0 : index
    %11 = vector.load %arg8[%c0_13, %c0_14, %c0_15] : memref<8x8x512xf32, #tpu.memory_space<vmem>>, vector<1x8x512xf32>
    %12 = vector.shape_cast %11 : vector<1x8x512xf32> to vector<8x512xf32>
    %cst_16 = arith.constant dense<0.000000e+00> : vector<8x512xf32>
    %13 = tpu.matmul %9, %8, %cst_16 {dimension_numbers = #tpu.dot_dimension_numbers<[1], [0], [0], [1], [0, 0, 1, 1], [], []>} : vector<8x128xf32>, vector<128x512xf32>, vector<8x512xf32> -> vector<8x512xf32>
    %14 = arith.addf %12, %13 : vector<8x512xf32>
    %15 = vector.extract_strided_slice %14 {offsets = [0, 0], sizes = [8, 128], strides = [1, 1]} : vector<8x512xf32> to vector<8x128xf32>
    %16 = arith.negf %15 : vector<8x128xf32>
    %17 = math.exp %16 : vector<8x128xf32>
    %cst_17 = arith.constant 1.000000e+00 : f32
    %18 = vector.broadcast %cst_17 : f32 to vector<8x128xf32>
    %19 = arith.addf %18, %17 : vector<8x128xf32>
    %20 = arith.divf %18, %19 : vector<8x128xf32>
    %21 = vector.extract_strided_slice %14 {offsets = [0, 128], sizes = [8, 128], strides = [1, 1]} : vector<8x512xf32> to vector<8x128xf32>
    %22 = arith.negf %21 : vector<8x128xf32>
    %23 = math.exp %22 : vector<8x128xf32>
    %cst_18 = arith.constant 1.000000e+00 : f32
    %24 = vector.broadcast %cst_18 : f32 to vector<8x128xf32>
    %25 = arith.addf %24, %23 : vector<8x128xf32>
    %26 = arith.divf %24, %25 : vector<8x128xf32>
    %27 = vector.extract_strided_slice %14 {offsets = [0, 256], sizes = [8, 128], strides = [1, 1]} : vector<8x512xf32> to vector<8x128xf32>
    %28 = math.tanh %27 : vector<8x128xf32>
    %29 = vector.extract_strided_slice %14 {offsets = [0, 384], sizes = [8, 128], strides = [1, 1]} : vector<8x512xf32> to vector<8x128xf32>
    %30 = arith.negf %29 : vector<8x128xf32>
    %31 = math.exp %30 : vector<8x128xf32>
    %cst_19 = arith.constant 1.000000e+00 : f32
    %32 = vector.broadcast %cst_19 : f32 to vector<8x128xf32>
    %33 = arith.addf %32, %31 : vector<8x128xf32>
    %34 = arith.divf %32, %33 : vector<8x128xf32>
    %35 = arith.mulf %26, %10 : vector<8x128xf32>
    %36 = arith.mulf %20, %28 : vector<8x128xf32>
    %37 = arith.addf %35, %36 : vector<8x128xf32>
    %38 = math.tanh %37 : vector<8x128xf32>
    %39 = arith.mulf %34, %38 : vector<8x128xf32>
    %c0_20 = arith.constant 0 : index
    %c0_21 = arith.constant 0 : index
    %c0_22 = arith.constant 0 : index
    %40 = vector.load %arg9[%c0_20, %c0_21, %c0_22] : memref<8x8x128xf32, #tpu.memory_space<vmem>>, vector<1x8x128xf32>
    %41 = vector.shape_cast %40 : vector<1x8x128xf32> to vector<8x128xf32>
    %42 = vector.shape_cast %39 : vector<8x128xf32> to vector<1x8x128xf32>
    tpu.vector_store %arg9[%c0_20, %c0_21, %c0_22], %42 {strides = array<i32>} : memref<8x8x128xf32, #tpu.memory_space<vmem>>, vector<1x8x128xf32>,
    %c7 = arith.constant 7 : index
    %c0_23 = arith.constant 0 : index
    %c0_24 = arith.constant 0 : index
    %43 = vector.load %arg10[%c7, %c0_23, %c0_24] : memref<8x8x128xf32, #tpu.memory_space<vmem>>, vector<1x8x128xf32>
    %44 = vector.shape_cast %43 : vector<1x8x128xf32> to vector<8x128xf32>
    %45 = vector.shape_cast %39 : vector<8x128xf32> to vector<1x8x128xf32>
    tpu.vector_store %arg10[%c7, %c0_23, %c0_24], %45 {strides = array<i32>} : memref<8x8x128xf32, #tpu.memory_space<vmem>>, vector<1x8x128xf32>,
    %c1 = arith.constant 1 : index
    %c0_25 = arith.constant 0 : index
    %c0_26 = arith.constant 0 : index
    %46 = vector.load %arg8[%c1, %c0_25, %c0_26] : memref<8x8x512xf32, #tpu.memory_space<vmem>>, vector<1x8x512xf32>
    %47 = vector.shape_cast %46 : vector<1x8x512xf32> to vector<8x512xf32>
    %cst_27 = arith.constant dense<0.000000e+00> : vector<8x512xf32>
    %48 = tpu.matmul %39, %8, %cst_27 {dimension_numbers = #tpu.dot_dimension_numbers<[1], [0], [0], [1], [0, 0, 1, 1], [], []>} : vector<8x128xf32>, vector<128x512xf32>, vector<8x512xf32> -> vector<8x512xf32>
    %49 = arith.addf %47, %48 : vector<8x512xf32>
    %50 = vector.extract_strided_slice %49 {offsets = [0, 0], sizes = [8, 128], strides = [1, 1]} : vector<8x512xf32> to vector<8x128xf32>
    %51 = arith.negf %50 : vector<8x128xf32>
    %52 = math.exp %51 : vector<8x128xf32>
    %cst_28 = arith.constant 1.000000e+00 : f32
    %53 = vector.broadcast %cst_28 : f32 to vector<8x128xf32>
    %54 = arith.addf %53, %52 : vector<8x128xf32>
    %55 = arith.divf %53, %54 : vector<8x128xf32>
    %56 = vector.extract_strided_slice %49 {offsets = [0, 128], sizes = [8, 128], strides = [1, 1]} : vector<8x512xf32> to vector<8x128xf32>
    %57 = arith.negf %56 : vector<8x128xf32>
    %58 = math.exp %57 : vector<8x128xf32>
    %cst_29 = arith.constant 1.000000e+00 : f32
    %59 = vector.broadcast %cst_29 : f32 to vector<8x128xf32>
    %60 = arith.addf %59, %58 : vector<8x128xf32>
    %61 = arith.divf %59, %60 : vector<8x128xf32>
    %62 = vector.extract_strided_slice %49 {offsets = [0, 256], sizes = [8, 128], strides = [1, 1]} : vector<8x512xf32> to vector<8x128xf32>
    %63 = math.tanh %62 : vector<8x128xf32>
    %64 = vector.extract_strided_slice %49 {offsets = [0, 384], sizes = [8, 128], strides = [1, 1]} : vector<8x512xf32> to vector<8x128xf32>
    %65 = arith.negf %64 : vector<8x128xf32>
    %66 = math.exp %65 : vector<8x128xf32>
    %cst_30 = arith.constant 1.000000e+00 : f32
    %67 = vector.broadcast %cst_30 : f32 to vector<8x128xf32>
    %68 = arith.addf %67, %66 : vector<8x128xf32>
    %69 = arith.divf %67, %68 : vector<8x128xf32>
    %70 = arith.mulf %61, %37 : vector<8x128xf32>
    %71 = arith.mulf %55, %63 : vector<8x128xf32>
    %72 = arith.addf %70, %71 : vector<8x128xf32>
    %73 = math.tanh %72 : vector<8x128xf32>
    %74 = arith.mulf %69, %73 : vector<8x128xf32>
    %c1_31 = arith.constant 1 : index
    %c0_32 = arith.constant 0 : index
    %c0_33 = arith.constant 0 : index
    %75 = vector.load %arg9[%c1_31, %c0_32, %c0_33] : memref<8x8x128xf32, #tpu.memory_space<vmem>>, vector<1x8x128xf32>
    %76 = vector.shape_cast %75 : vector<1x8x128xf32> to vector<8x128xf32>
    %77 = vector.shape_cast %74 : vector<8x128xf32> to vector<1x8x128xf32>
    tpu.vector_store %arg9[%c1_31, %c0_32, %c0_33], %77 {strides = array<i32>} : memref<8x8x128xf32, #tpu.memory_space<vmem>>, vector<1x8x128xf32>,
    %c6 = arith.constant 6 : index
    %c0_34 = arith.constant 0 : index
    %c0_35 = arith.constant 0 : index
    %78 = vector.load %arg10[%c6, %c0_34, %c0_35] : memref<8x8x128xf32, #tpu.memory_space<vmem>>, vector<1x8x128xf32>
    %79 = vector.shape_cast %78 : vector<1x8x128xf32> to vector<8x128xf32>
    %80 = vector.shape_cast %74 : vector<8x128xf32> to vector<1x8x128xf32>
    tpu.vector_store %arg10[%c6, %c0_34, %c0_35], %80 {strides = array<i32>} : memref<8x8x128xf32, #tpu.memory_space<vmem>>, vector<1x8x128xf32>,
    %c2 = arith.constant 2 : index
    %c0_36 = arith.constant 0 : index
    %c0_37 = arith.constant 0 : index
    %81 = vector.load %arg8[%c2, %c0_36, %c0_37] : memref<8x8x512xf32, #tpu.memory_space<vmem>>, vector<1x8x512xf32>
    %82 = vector.shape_cast %81 : vector<1x8x512xf32> to vector<8x512xf32>
    %cst_38 = arith.constant dense<0.000000e+00> : vector<8x512xf32>
    %83 = tpu.matmul %74, %8, %cst_38 {dimension_numbers = #tpu.dot_dimension_numbers<[1], [0], [0], [1], [0, 0, 1, 1], [], []>} : vector<8x128xf32>, vector<128x512xf32>, vector<8x512xf32> -> vector<8x512xf32>
    %84 = arith.addf %82, %83 : vector<8x512xf32>
    %85 = vector.extract_strided_slice %84 {offsets = [0, 0], sizes = [8, 128], strides = [1, 1]} : vector<8x512xf32> to vector<8x128xf32>
    %86 = arith.negf %85 : vector<8x128xf32>
    %87 = math.exp %86 : vector<8x128xf32>
    %cst_39 = arith.constant 1.000000e+00 : f32
    %88 = vector.broadcast %cst_39 : f32 to vector<8x128xf32>
    %89 = arith.addf %88, %87 : vector<8x128xf32>
    %90 = arith.divf %88, %89 : vector<8x128xf32>
    %91 = vector.extract_strided_slice %84 {offsets = [0, 128], sizes = [8, 128], strides = [1, 1]} : vector<8x512xf32> to vector<8x128xf32>
    %92 = arith.negf %91 : vector<8x128xf32>
    %93 = math.exp %92 : vector<8x128xf32>
    %cst_40 = arith.constant 1.000000e+00 : f32
    %94 = vector.broadcast %cst_40 : f32 to vector<8x128xf32>
    %95 = arith.addf %94, %93 : vector<8x128xf32>
    %96 = arith.divf %94, %95 : vector<8x128xf32>
    %97 = vector.extract_strided_slice %84 {offsets = [0, 256], sizes = [8, 128], strides = [1, 1]} : vector<8x512xf32> to vector<8x128xf32>
    %98 = math.tanh %97 : vector<8x128xf32>
    %99 = vector.extract_strided_slice %84 {offsets = [0, 384], sizes = [8, 128], strides = [1, 1]} : vector<8x512xf32> to vector<8x128xf32>
    %100 = arith.negf %99 : vector<8x128xf32>
    %101 = math.exp %100 : vector<8x128xf32>
    %cst_41 = arith.constant 1.000000e+00 : f32
    %102 = vector.broadcast %cst_41 : f32 to vector<8x128xf32>
    %103 = arith.addf %102, %101 : vector<8x128xf32>
    %104 = arith.divf %102, %103 : vector<8x128xf32>
    %105 = arith.mulf %96, %72 : vector<8x128xf32>
    %106 = arith.mulf %90, %98 : vector<8x128xf32>
    %107 = arith.addf %105, %106 : vector<8x128xf32>
    %108 = math.tanh %107 : vector<8x128xf32>
    %109 = arith.mulf %104, %108 : vector<8x128xf32>
    %c2_42 = arith.constant 2 : index
    %c0_43 = arith.constant 0 : index
    %c0_44 = arith.constant 0 : index
    %110 = vector.load %arg9[%c2_42, %c0_43, %c0_44] : memref<8x8x128xf32, #tpu.memory_space<vmem>>, vector<1x8x128xf32>
    %111 = vector.shape_cast %110 : vector<1x8x128xf32> to vector<8x128xf32>
    %112 = vector.shape_cast %109 : vector<8x128xf32> to vector<1x8x128xf32>
    tpu.vector_store %arg9[%c2_42, %c0_43, %c0_44], %112 {strides = array<i32>} : memref<8x8x128xf32, #tpu.memory_space<vmem>>, vector<1x8x128xf32>,
    %c5 = arith.constant 5 : index
    %c0_45 = arith.constant 0 : index
    %c0_46 = arith.constant 0 : index
    %113 = vector.load %arg10[%c5, %c0_45, %c0_46] : memref<8x8x128xf32, #tpu.memory_space<vmem>>, vector<1x8x128xf32>
    %114 = vector.shape_cast %113 : vector<1x8x128xf32> to vector<8x128xf32>
    %115 = vector.shape_cast %109 : vector<8x128xf32> to vector<1x8x128xf32>
    tpu.vector_store %arg10[%c5, %c0_45, %c0_46], %115 {strides = array<i32>} : memref<8x8x128xf32, #tpu.memory_space<vmem>>, vector<1x8x128xf32>,
    %c3 = arith.constant 3 : index
    %c0_47 = arith.constant 0 : index
    %c0_48 = arith.constant 0 : index
    %116 = vector.load %arg8[%c3, %c0_47, %c0_48] : memref<8x8x512xf32, #tpu.memory_space<vmem>>, vector<1x8x512xf32>
    %117 = vector.shape_cast %116 : vector<1x8x512xf32> to vector<8x512xf32>
    %cst_49 = arith.constant dense<0.000000e+00> : vector<8x512xf32>
    %118 = tpu.matmul %109, %8, %cst_49 {dimension_numbers = #tpu.dot_dimension_numbers<[1], [0], [0], [1], [0, 0, 1, 1], [], []>} : vector<8x128xf32>, vector<128x512xf32>, vector<8x512xf32> -> vector<8x512xf32>
    %119 = arith.addf %117, %118 : vector<8x512xf32>
    %120 = vector.extract_strided_slice %119 {offsets = [0, 0], sizes = [8, 128], strides = [1, 1]} : vector<8x512xf32> to vector<8x128xf32>
    %121 = arith.negf %120 : vector<8x128xf32>
    %122 = math.exp %121 : vector<8x128xf32>
    %cst_50 = arith.constant 1.000000e+00 : f32
    %123 = vector.broadcast %cst_50 : f32 to vector<8x128xf32>
    %124 = arith.addf %123, %122 : vector<8x128xf32>
    %125 = arith.divf %123, %124 : vector<8x128xf32>
    %126 = vector.extract_strided_slice %119 {offsets = [0, 128], sizes = [8, 128], strides = [1, 1]} : vector<8x512xf32> to vector<8x128xf32>
    %127 = arith.negf %126 : vector<8x128xf32>
    %128 = math.exp %127 : vector<8x128xf32>
    %cst_51 = arith.constant 1.000000e+00 : f32
    %129 = vector.broadcast %cst_51 : f32 to vector<8x128xf32>
    %130 = arith.addf %129, %128 : vector<8x128xf32>
    %131 = arith.divf %129, %130 : vector<8x128xf32>
    %132 = vector.extract_strided_slice %119 {offsets = [0, 256], sizes = [8, 128], strides = [1, 1]} : vector<8x512xf32> to vector<8x128xf32>
    %133 = math.tanh %132 : vector<8x128xf32>
    %134 = vector.extract_strided_slice %119 {offsets = [0, 384], sizes = [8, 128], strides = [1, 1]} : vector<8x512xf32> to vector<8x128xf32>
    %135 = arith.negf %134 : vector<8x128xf32>
    %136 = math.exp %135 : vector<8x128xf32>
    %cst_52 = arith.constant 1.000000e+00 : f32
    %137 = vector.broadcast %cst_52 : f32 to vector<8x128xf32>
    %138 = arith.addf %137, %136 : vector<8x128xf32>
    %139 = arith.divf %137, %138 : vector<8x128xf32>
    %140 = arith.mulf %131, %107 : vector<8x128xf32>
    %141 = arith.mulf %125, %133 : vector<8x128xf32>
    %142 = arith.addf %140, %141 : vector<8x128xf32>
    %143 = math.tanh %142 : vector<8x128xf32>
    %144 = arith.mulf %139, %143 : vector<8x128xf32>
    %c3_53 = arith.constant 3 : index
    %c0_54 = arith.constant 0 : index
    %c0_55 = arith.constant 0 : index
    %145 = vector.load %arg9[%c3_53, %c0_54, %c0_55] : memref<8x8x128xf32, #tpu.memory_space<vmem>>, vector<1x8x128xf32>
    %146 = vector.shape_cast %145 : vector<1x8x128xf32> to vector<8x128xf32>
    %147 = vector.shape_cast %144 : vector<8x128xf32> to vector<1x8x128xf32>
    tpu.vector_store %arg9[%c3_53, %c0_54, %c0_55], %147 {strides = array<i32>} : memref<8x8x128xf32, #tpu.memory_space<vmem>>, vector<1x8x128xf32>,
    %c4 = arith.constant 4 : index
    %c0_56 = arith.constant 0 : index
    %c0_57 = arith.constant 0 : index
    %148 = vector.load %arg10[%c4, %c0_56, %c0_57] : memref<8x8x128xf32, #tpu.memory_space<vmem>>, vector<1x8x128xf32>
    %149 = vector.shape_cast %148 : vector<1x8x128xf32> to vector<8x128xf32>
    %150 = vector.shape_cast %144 : vector<8x128xf32> to vector<1x8x128xf32>
    tpu.vector_store %arg10[%c4, %c0_56, %c0_57], %150 {strides = array<i32>} : memref<8x8x128xf32, #tpu.memory_space<vmem>>, vector<1x8x128xf32>,
    %c4_58 = arith.constant 4 : index
    %c0_59 = arith.constant 0 : index
    %c0_60 = arith.constant 0 : index
    %151 = vector.load %arg8[%c4_58, %c0_59, %c0_60] : memref<8x8x512xf32, #tpu.memory_space<vmem>>, vector<1x8x512xf32>
    %152 = vector.shape_cast %151 : vector<1x8x512xf32> to vector<8x512xf32>
    %cst_61 = arith.constant dense<0.000000e+00> : vector<8x512xf32>
    %153 = tpu.matmul %144, %8, %cst_61 {dimension_numbers = #tpu.dot_dimension_numbers<[1], [0], [0], [1], [0, 0, 1, 1], [], []>} : vector<8x128xf32>, vector<128x512xf32>, vector<8x512xf32> -> vector<8x512xf32>
    %154 = arith.addf %152, %153 : vector<8x512xf32>
    %155 = vector.extract_strided_slice %154 {offsets = [0, 0], sizes = [8, 128], strides = [1, 1]} : vector<8x512xf32> to vector<8x128xf32>
    %156 = arith.negf %155 : vector<8x128xf32>
    %157 = math.exp %156 : vector<8x128xf32>
    %cst_62 = arith.constant 1.000000e+00 : f32
    %158 = vector.broadcast %cst_62 : f32 to vector<8x128xf32>
    %159 = arith.addf %158, %157 : vector<8x128xf32>
    %160 = arith.divf %158, %159 : vector<8x128xf32>
    %161 = vector.extract_strided_slice %154 {offsets = [0, 128], sizes = [8, 128], strides = [1, 1]} : vector<8x512xf32> to vector<8x128xf32>
    %162 = arith.negf %161 : vector<8x128xf32>
    %163 = math.exp %162 : vector<8x128xf32>
    %cst_63 = arith.constant 1.000000e+00 : f32
    %164 = vector.broadcast %cst_63 : f32 to vector<8x128xf32>
    %165 = arith.addf %164, %163 : vector<8x128xf32>
    %166 = arith.divf %164, %165 : vector<8x128xf32>
    %167 = vector.extract_strided_slice %154 {offsets = [0, 256], sizes = [8, 128], strides = [1, 1]} : vector<8x512xf32> to vector<8x128xf32>
    %168 = math.tanh %167 : vector<8x128xf32>
    %169 = vector.extract_strided_slice %154 {offsets = [0, 384], sizes = [8, 128], strides = [1, 1]} : vector<8x512xf32> to vector<8x128xf32>
    %170 = arith.negf %169 : vector<8x128xf32>
    %171 = math.exp %170 : vector<8x128xf32>
    %cst_64 = arith.constant 1.000000e+00 : f32
    %172 = vector.broadcast %cst_64 : f32 to vector<8x128xf32>
    %173 = arith.addf %172, %171 : vector<8x128xf32>
    %174 = arith.divf %172, %173 : vector<8x128xf32>
    %175 = arith.mulf %166, %142 : vector<8x128xf32>
    %176 = arith.mulf %160, %168 : vector<8x128xf32>
    %177 = arith.addf %175, %176 : vector<8x128xf32>
    %178 = math.tanh %177 : vector<8x128xf32>
    %179 = arith.mulf %174, %178 : vector<8x128xf32>
    %c4_65 = arith.constant 4 : index
    %c0_66 = arith.constant 0 : index
    %c0_67 = arith.constant 0 : index
    %180 = vector.load %arg9[%c4_65, %c0_66, %c0_67] : memref<8x8x128xf32, #tpu.memory_space<vmem>>, vector<1x8x128xf32>
    %181 = vector.shape_cast %180 : vector<1x8x128xf32> to vector<8x128xf32>
    %182 = vector.shape_cast %179 : vector<8x128xf32> to vector<1x8x128xf32>
    tpu.vector_store %arg9[%c4_65, %c0_66, %c0_67], %182 {strides = array<i32>} : memref<8x8x128xf32, #tpu.memory_space<vmem>>, vector<1x8x128xf32>,
    %c3_68 = arith.constant 3 : index
    %c0_69 = arith.constant 0 : index
    %c0_70 = arith.constant 0 : index
    %183 = vector.load %arg10[%c3_68, %c0_69, %c0_70] : memref<8x8x128xf32, #tpu.memory_space<vmem>>, vector<1x8x128xf32>
    %184 = vector.shape_cast %183 : vector<1x8x128xf32> to vector<8x128xf32>
    %185 = vector.shape_cast %179 : vector<8x128xf32> to vector<1x8x128xf32>
    tpu.vector_store %arg10[%c3_68, %c0_69, %c0_70], %185 {strides = array<i32>} : memref<8x8x128xf32, #tpu.memory_space<vmem>>, vector<1x8x128xf32>,
    %c5_71 = arith.constant 5 : index
    %c0_72 = arith.constant 0 : index
    %c0_73 = arith.constant 0 : index
    %186 = vector.load %arg8[%c5_71, %c0_72, %c0_73] : memref<8x8x512xf32, #tpu.memory_space<vmem>>, vector<1x8x512xf32>
    %187 = vector.shape_cast %186 : vector<1x8x512xf32> to vector<8x512xf32>
    %cst_74 = arith.constant dense<0.000000e+00> : vector<8x512xf32>
    %188 = tpu.matmul %179, %8, %cst_74 {dimension_numbers = #tpu.dot_dimension_numbers<[1], [0], [0], [1], [0, 0, 1, 1], [], []>} : vector<8x128xf32>, vector<128x512xf32>, vector<8x512xf32> -> vector<8x512xf32>
    %189 = arith.addf %187, %188 : vector<8x512xf32>
    %190 = vector.extract_strided_slice %189 {offsets = [0, 0], sizes = [8, 128], strides = [1, 1]} : vector<8x512xf32> to vector<8x128xf32>
    %191 = arith.negf %190 : vector<8x128xf32>
    %192 = math.exp %191 : vector<8x128xf32>
    %cst_75 = arith.constant 1.000000e+00 : f32
    %193 = vector.broadcast %cst_75 : f32 to vector<8x128xf32>
    %194 = arith.addf %193, %192 : vector<8x128xf32>
    %195 = arith.divf %193, %194 : vector<8x128xf32>
    %196 = vector.extract_strided_slice %189 {offsets = [0, 128], sizes = [8, 128], strides = [1, 1]} : vector<8x512xf32> to vector<8x128xf32>
    %197 = arith.negf %196 : vector<8x128xf32>
    %198 = math.exp %197 : vector<8x128xf32>
    %cst_76 = arith.constant 1.000000e+00 : f32
    %199 = vector.broadcast %cst_76 : f32 to vector<8x128xf32>
    %200 = arith.addf %199, %198 : vector<8x128xf32>
    %201 = arith.divf %199, %200 : vector<8x128xf32>
    %202 = vector.extract_strided_slice %189 {offsets = [0, 256], sizes = [8, 128], strides = [1, 1]} : vector<8x512xf32> to vector<8x128xf32>
    %203 = math.tanh %202 : vector<8x128xf32>
    %204 = vector.extract_strided_slice %189 {offsets = [0, 384], sizes = [8, 128], strides = [1, 1]} : vector<8x512xf32> to vector<8x128xf32>
    %205 = arith.negf %204 : vector<8x128xf32>
    %206 = math.exp %205 : vector<8x128xf32>
    %cst_77 = arith.constant 1.000000e+00 : f32
    %207 = vector.broadcast %cst_77 : f32 to vector<8x128xf32>
    %208 = arith.addf %207, %206 : vector<8x128xf32>
    %209 = arith.divf %207, %208 : vector<8x128xf32>
    %210 = arith.mulf %201, %177 : vector<8x128xf32>
    %211 = arith.mulf %195, %203 : vector<8x128xf32>
    %212 = arith.addf %210, %211 : vector<8x128xf32>
    %213 = math.tanh %212 : vector<8x128xf32>
    %214 = arith.mulf %209, %213 : vector<8x128xf32>
    %c5_78 = arith.constant 5 : index
    %c0_79 = arith.constant 0 : index
    %c0_80 = arith.constant 0 : index
    %215 = vector.load %arg9[%c5_78, %c0_79, %c0_80] : memref<8x8x128xf32, #tpu.memory_space<vmem>>, vector<1x8x128xf32>
    %216 = vector.shape_cast %215 : vector<1x8x128xf32> to vector<8x128xf32>
    %217 = vector.shape_cast %214 : vector<8x128xf32> to vector<1x8x128xf32>
    tpu.vector_store %arg9[%c5_78, %c0_79, %c0_80], %217 {strides = array<i32>} : memref<8x8x128xf32, #tpu.memory_space<vmem>>, vector<1x8x128xf32>,
    %c2_81 = arith.constant 2 : index
    %c0_82 = arith.constant 0 : index
    %c0_83 = arith.constant 0 : index
    %218 = vector.load %arg10[%c2_81, %c0_82, %c0_83] : memref<8x8x128xf32, #tpu.memory_space<vmem>>, vector<1x8x128xf32>
    %219 = vector.shape_cast %218 : vector<1x8x128xf32> to vector<8x128xf32>
    %220 = vector.shape_cast %214 : vector<8x128xf32> to vector<1x8x128xf32>
    tpu.vector_store %arg10[%c2_81, %c0_82, %c0_83], %220 {strides = array<i32>} : memref<8x8x128xf32, #tpu.memory_space<vmem>>, vector<1x8x128xf32>,
    %c6_84 = arith.constant 6 : index
    %c0_85 = arith.constant 0 : index
    %c0_86 = arith.constant 0 : index
    %221 = vector.load %arg8[%c6_84, %c0_85, %c0_86] : memref<8x8x512xf32, #tpu.memory_space<vmem>>, vector<1x8x512xf32>
    %222 = vector.shape_cast %221 : vector<1x8x512xf32> to vector<8x512xf32>
    %cst_87 = arith.constant dense<0.000000e+00> : vector<8x512xf32>
    %223 = tpu.matmul %214, %8, %cst_87 {dimension_numbers = #tpu.dot_dimension_numbers<[1], [0], [0], [1], [0, 0, 1, 1], [], []>} : vector<8x128xf32>, vector<128x512xf32>, vector<8x512xf32> -> vector<8x512xf32>
    %224 = arith.addf %222, %223 : vector<8x512xf32>
    %225 = vector.extract_strided_slice %224 {offsets = [0, 0], sizes = [8, 128], strides = [1, 1]} : vector<8x512xf32> to vector<8x128xf32>
    %226 = arith.negf %225 : vector<8x128xf32>
    %227 = math.exp %226 : vector<8x128xf32>
    %cst_88 = arith.constant 1.000000e+00 : f32
    %228 = vector.broadcast %cst_88 : f32 to vector<8x128xf32>
    %229 = arith.addf %228, %227 : vector<8x128xf32>
    %230 = arith.divf %228, %229 : vector<8x128xf32>
    %231 = vector.extract_strided_slice %224 {offsets = [0, 128], sizes = [8, 128], strides = [1, 1]} : vector<8x512xf32> to vector<8x128xf32>
    %232 = arith.negf %231 : vector<8x128xf32>
    %233 = math.exp %232 : vector<8x128xf32>
    %cst_89 = arith.constant 1.000000e+00 : f32
    %234 = vector.broadcast %cst_89 : f32 to vector<8x128xf32>
    %235 = arith.addf %234, %233 : vector<8x128xf32>
    %236 = arith.divf %234, %235 : vector<8x128xf32>
    %237 = vector.extract_strided_slice %224 {offsets = [0, 256], sizes = [8, 128], strides = [1, 1]} : vector<8x512xf32> to vector<8x128xf32>
    %238 = math.tanh %237 : vector<8x128xf32>
    %239 = vector.extract_strided_slice %224 {offsets = [0, 384], sizes = [8, 128], strides = [1, 1]} : vector<8x512xf32> to vector<8x128xf32>
    %240 = arith.negf %239 : vector<8x128xf32>
    %241 = math.exp %240 : vector<8x128xf32>
    %cst_90 = arith.constant 1.000000e+00 : f32
    %242 = vector.broadcast %cst_90 : f32 to vector<8x128xf32>
    %243 = arith.addf %242, %241 : vector<8x128xf32>
    %244 = arith.divf %242, %243 : vector<8x128xf32>
    %245 = arith.mulf %236, %212 : vector<8x128xf32>
    %246 = arith.mulf %230, %238 : vector<8x128xf32>
    %247 = arith.addf %245, %246 : vector<8x128xf32>
    %248 = math.tanh %247 : vector<8x128xf32>
    %249 = arith.mulf %244, %248 : vector<8x128xf32>
    %c6_91 = arith.constant 6 : index
    %c0_92 = arith.constant 0 : index
    %c0_93 = arith.constant 0 : index
    %250 = vector.load %arg9[%c6_91, %c0_92, %c0_93] : memref<8x8x128xf32, #tpu.memory_space<vmem>>, vector<1x8x128xf32>
    %251 = vector.shape_cast %250 : vector<1x8x128xf32> to vector<8x128xf32>
    %252 = vector.shape_cast %249 : vector<8x128xf32> to vector<1x8x128xf32>
    tpu.vector_store %arg9[%c6_91, %c0_92, %c0_93], %252 {strides = array<i32>} : memref<8x8x128xf32, #tpu.memory_space<vmem>>, vector<1x8x128xf32>,
    %c1_94 = arith.constant 1 : index
    %c0_95 = arith.constant 0 : index
    %c0_96 = arith.constant 0 : index
    %253 = vector.load %arg10[%c1_94, %c0_95, %c0_96] : memref<8x8x128xf32, #tpu.memory_space<vmem>>, vector<1x8x128xf32>
    %254 = vector.shape_cast %253 : vector<1x8x128xf32> to vector<8x128xf32>
    %255 = vector.shape_cast %249 : vector<8x128xf32> to vector<1x8x128xf32>
    tpu.vector_store %arg10[%c1_94, %c0_95, %c0_96], %255 {strides = array<i32>} : memref<8x8x128xf32, #tpu.memory_space<vmem>>, vector<1x8x128xf32>,
    %c7_97 = arith.constant 7 : index
    %c0_98 = arith.constant 0 : index
    %c0_99 = arith.constant 0 : index
    %256 = vector.load %arg8[%c7_97, %c0_98, %c0_99] : memref<8x8x512xf32, #tpu.memory_space<vmem>>, vector<1x8x512xf32>
    %257 = vector.shape_cast %256 : vector<1x8x512xf32> to vector<8x512xf32>
    %cst_100 = arith.constant dense<0.000000e+00> : vector<8x512xf32>
    %258 = tpu.matmul %249, %8, %cst_100 {dimension_numbers = #tpu.dot_dimension_numbers<[1], [0], [0], [1], [0, 0, 1, 1], [], []>} : vector<8x128xf32>, vector<128x512xf32>, vector<8x512xf32> -> vector<8x512xf32>
    %259 = arith.addf %257, %258 : vector<8x512xf32>
    %260 = vector.extract_strided_slice %259 {offsets = [0, 0], sizes = [8, 128], strides = [1, 1]} : vector<8x512xf32> to vector<8x128xf32>
    %261 = arith.negf %260 : vector<8x128xf32>
    %262 = math.exp %261 : vector<8x128xf32>
    %cst_101 = arith.constant 1.000000e+00 : f32
    %263 = vector.broadcast %cst_101 : f32 to vector<8x128xf32>
    %264 = arith.addf %263, %262 : vector<8x128xf32>
    %265 = arith.divf %263, %264 : vector<8x128xf32>
    %266 = vector.extract_strided_slice %259 {offsets = [0, 128], sizes = [8, 128], strides = [1, 1]} : vector<8x512xf32> to vector<8x128xf32>
    %267 = arith.negf %266 : vector<8x128xf32>
    %268 = math.exp %267 : vector<8x128xf32>
    %cst_102 = arith.constant 1.000000e+00 : f32
    %269 = vector.broadcast %cst_102 : f32 to vector<8x128xf32>
    %270 = arith.addf %269, %268 : vector<8x128xf32>
    %271 = arith.divf %269, %270 : vector<8x128xf32>
    %272 = vector.extract_strided_slice %259 {offsets = [0, 256], sizes = [8, 128], strides = [1, 1]} : vector<8x512xf32> to vector<8x128xf32>
    %273 = math.tanh %272 : vector<8x128xf32>
    %274 = vector.extract_strided_slice %259 {offsets = [0, 384], sizes = [8, 128], strides = [1, 1]} : vector<8x512xf32> to vector<8x128xf32>
    %275 = arith.negf %274 : vector<8x128xf32>
    %276 = math.exp %275 : vector<8x128xf32>
    %cst_103 = arith.constant 1.000000e+00 : f32
    %277 = vector.broadcast %cst_103 : f32 to vector<8x128xf32>
    %278 = arith.addf %277, %276 : vector<8x128xf32>
    %279 = arith.divf %277, %278 : vector<8x128xf32>
    %280 = arith.mulf %271, %247 : vector<8x128xf32>
    %281 = arith.mulf %265, %273 : vector<8x128xf32>
    %282 = arith.addf %280, %281 : vector<8x128xf32>
    %283 = math.tanh %282 : vector<8x128xf32>
    %284 = arith.mulf %279, %283 : vector<8x128xf32>
    %c7_104 = arith.constant 7 : index
    %c0_105 = arith.constant 0 : index
    %c0_106 = arith.constant 0 : index
    %285 = vector.load %arg9[%c7_104, %c0_105, %c0_106] : memref<8x8x128xf32, #tpu.memory_space<vmem>>, vector<1x8x128xf32>
    %286 = vector.shape_cast %285 : vector<1x8x128xf32> to vector<8x128xf32>
    %287 = vector.shape_cast %284 : vector<8x128xf32> to vector<1x8x128xf32>
    tpu.vector_store %arg9[%c7_104, %c0_105, %c0_106], %287 {strides = array<i32>} : memref<8x8x128xf32, #tpu.memory_space<vmem>>, vector<1x8x128xf32>,
    %c0_107 = arith.constant 0 : index
    %c0_108 = arith.constant 0 : index
    %c0_109 = arith.constant 0 : index
    %288 = vector.load %arg10[%c0_107, %c0_108, %c0_109] : memref<8x8x128xf32, #tpu.memory_space<vmem>>, vector<1x8x128xf32>
    %289 = vector.shape_cast %288 : vector<1x8x128xf32> to vector<8x128xf32>
    %290 = vector.shape_cast %284 : vector<8x128xf32> to vector<1x8x128xf32>
    tpu.vector_store %arg10[%c0_107, %c0_108, %c0_109], %290 {strides = array<i32>} : memref<8x8x128xf32, #tpu.memory_space<vmem>>, vector<1x8x128xf32>,
    %c0_110 = arith.constant 0 : index
    %c0_111 = arith.constant 0 : index
    %c0_112 = arith.constant 0 : index
    %291 = vector.load %arg9[%c0_110, %c0_111, %c0_112] : memref<8x8x128xf32, #tpu.memory_space<vmem>>, vector<8x8x128xf32>
    %c0_113 = arith.constant 0 : index
    %c0_114 = arith.constant 0 : index
    %292 = vector.load %arg5[%c0_113, %c0_114] : memref<128x2xf32, #tpu.memory_space<vmem>>, vector<128x2xf32>
    "tpu.trace_start"() <{level = 10 : i32, message = "tbh,hk->tbk"}> : () -> ()
    %cst_115 = arith.constant dense<0.000000e+00> : vector<8x8x2xf32>
    %293 = tpu.matmul %291, %292, %cst_115 {dimension_numbers = #tpu.dot_dimension_numbers<[2], [0], [0, 1], [1], [0, 0, 0, 1, 1, 1], [], []>} : vector<8x8x128xf32>, vector<128x2xf32>, vector<8x8x2xf32> -> vector<8x8x2xf32>
    "tpu.trace_stop"() : () -> ()
    %294 = vector.extract_strided_slice %293 {offsets = [0, 0, 0], sizes = [8, 8, 1], strides = [1, 1, 1]} : vector<8x8x2xf32> to vector<8x8x1xf32>
    %295 = vector.shape_cast %294 : vector<8x8x1xf32> to vector<8x8xf32>
    %c0_116 = arith.constant 0 : index
    %c0_117 = arith.constant 0 : index
    %c0_118 = arith.constant 0 : index
    %296 = vector.load %arg10[%c0_116, %c0_117, %c0_118] : memref<8x8x128xf32, #tpu.memory_space<vmem>>, vector<8x8x128xf32>
    %c0_119 = arith.constant 0 : index
    %c0_120 = arith.constant 0 : index
    %297 = vector.load %arg5[%c0_119, %c0_120] : memref<128x2xf32, #tpu.memory_space<vmem>>, vector<128x2xf32>
    "tpu.trace_start"() <{level = 10 : i32, message = "tbh,hk->tbk"}> : () -> ()
    %cst_121 = arith.constant dense<0.000000e+00> : vector<8x8x2xf32>
    %298 = tpu.matmul %296, %297, %cst_121 {dimension_numbers = #tpu.dot_dimension_numbers<[2], [0], [0, 1], [1], [0, 0, 0, 1, 1, 1], [], []>} : vector<8x8x128xf32>, vector<128x2xf32>, vector<8x8x2xf32> -> vector<8x8x2xf32>
    "tpu.trace_stop"() : () -> ()
    %299 = vector.extract_strided_slice %298 {offsets = [0, 0, 1], sizes = [8, 8, 1], strides = [1, 1, 1]} : vector<8x8x2xf32> to vector<8x8x1xf32>
    %300 = vector.shape_cast %299 : vector<8x8x1xf32> to vector<8x8xf32>
    %301 = arith.addf %295, %300 : vector<8x8xf32>
    %c0_122 = arith.constant 0 : index
    %c0_123 = arith.constant 0 : index
    %302 = vector.load %arg6[%c0_122, %c0_123] : memref<1x1xf32, #tpu.memory_space<vmem>>, vector<1x1xf32>
    %303 = vector.extract %302[0, 0] : f32 from vector<1x1xf32>
    %304 = vector.broadcast %303 : f32 to vector<8x8xf32>
    %305 = arith.addf %301, %304 : vector<8x8xf32>
    %c0_124 = arith.constant 0 : index
    %c0_125 = arith.constant 0 : index
    %c0_126 = arith.constant 0 : index
    %306 = vector.load %arg7[%c0_124, %c0_125, %c0_126] : memref<1x8x8xf32, #tpu.memory_space<vmem>>, vector<1x8x8xf32>
    %307 = vector.shape_cast %306 : vector<1x8x8xf32> to vector<8x8xf32>
    %308 = vector.shape_cast %305 : vector<8x8xf32> to vector<1x8x8xf32>
    tpu.vector_store %arg7[%c0_124, %c0_125, %c0_126], %308 {strides = array<i32>} : memref<1x8x8xf32, #tpu.memory_space<vmem>>, vector<1x8x8xf32>,
    return
  }
  func.func @transform_0(%arg0: i32) -> (i32, i32, i32) {
    %c0_i32 = arith.constant 0 : i32
    %c0_i32_0 = arith.constant 0 : i32
    %c0_i32_1 = arith.constant 0 : i32
    return %c0_i32, %arg0, %c0_i32_0 : i32, i32, i32
  }
  func.func @transform_1(%arg0: i32) -> (i32, i32) {
    %c0_i32 = arith.constant 0 : i32
    %c0_i32_0 = arith.constant 0 : i32
    %c0_i32_1 = arith.constant 0 : i32
    return %c0_i32, %c0_i32_0 : i32, i32
  }
  func.func @transform_2(%arg0: i32) -> (i32, i32) {
    %c0_i32 = arith.constant 0 : i32
    %c0_i32_0 = arith.constant 0 : i32
    %c0_i32_1 = arith.constant 0 : i32
    return %c0_i32, %c0_i32_0 : i32, i32
  }
  func.func @transform_3(%arg0: i32) -> (i32, i32) {
    %c0_i32 = arith.constant 0 : i32
    %c0_i32_0 = arith.constant 0 : i32
    %c0_i32_1 = arith.constant 0 : i32
    return %c0_i32, %c0_i32_0 : i32, i32
  }
  func.func @transform_4(%arg0: i32) -> (i32, i32) {
    %c0_i32 = arith.constant 0 : i32
    %c0_i32_0 = arith.constant 0 : i32
    %c0_i32_1 = arith.constant 0 : i32
    return %c0_i32, %c0_i32_0 : i32, i32
  }
  func.func @transform_5(%arg0: i32) -> (i32, i32) {
    %c0_i32 = arith.constant 0 : i32
    %c0_i32_0 = arith.constant 0 : i32
    %c0_i32_1 = arith.constant 0 : i32
    return %c0_i32, %c0_i32_0 : i32, i32
  }
  func.func @transform_6(%arg0: i32) -> (i32, i32, i32) {
    %c0_i32 = arith.constant 0 : i32
    %c0_i32_0 = arith.constant 0 : i32
    %c0_i32_1 = arith.constant 0 : i32
    return %arg0, %c0_i32, %c0_i32_0 : i32, i32, i32
  }
}

</mosaic_0001>

<llo_original>
// kernel: tpu_custom_call.1
$region0: #{tpu_custom_call.1}
  #allocation0 [shape = 'u32[]', space=smem, size = 0x4, offset = 0x4, fixed_abs, tag = 'smem constant byte address 0x4 - core index']
  #allocation1 [shape = 'u32[72,128]{1,0:T(1,128)}', space=vmem, size = 0x9000, scoped, tag = 'internal scratch']
  #allocation2 [shape = 'f32[8,8,512]{2,1,0:T(8,128)}', space=vmem, size = 0x20000, scoped, tag = 'scratch operand']
  #allocation3 [shape = 'f32[8,8,128]{2,1,0:T(8,128)}', space=vmem, size = 0x8000, scoped, tag = 'scratch operand']
  #allocation4 [shape = 'f32[8,8,128]{2,1,0:T(8,128)}', space=vmem, size = 0x8000, scoped, tag = 'scratch operand']
  #allocation5 [shape = 'f32[1,1]{1,0:T(1,128)S(1)}', space=vmem, size = 0x200, scoped, tag = 'scoped memory for tpu_custom_call.1']
  %s0 = inlined_call_operand.hbm [shape: f32[8,8,20], index: 0, kind: input, shape index: {}]
  %s1 = inlined_call_operand.vmem [shape: f32[20,512], index: 1, kind: input, shape index: {}]
  %s2 = inlined_call_operand.hbm [shape: f32[128,512], index: 2, kind: input, shape index: {}]
  %s3 = inlined_call_operand.vmem [shape: f32[1,512], index: 3, kind: input, shape index: {}]
  %s4 = inlined_call_operand.vmem [shape: f32[128,2], index: 4, kind: input, shape index: {}]
  %s5 = inlined_call_operand.<no memory space> [shape: f32[1,1], index: 5, kind: input, shape index: {}]
  %s6 = inlined_call_operand.hbm [shape: f32[1,8,8], index: 6, kind: output, shape index: {}]
  %s7 = sld [smem:[#allocation0]]
  $region42: #{tpu_custom_call.1} parent=0
    _
  %s9 = ssub.s32 1, %s7
  %s10 = scalar_select 0, %s9, %s7
  %v11 = vstv %s5
  %12 = vst [vmem:[#allocation5] sm:$0x1] %v11
  $region1: #{tpu_custom_call.1} parent=0
    #allocation6 [shape = 'u8[32768]{0}', space=vmem, size = 0x8000, scoped, tag = 'input window, operand 0, single buffered']
    #allocation7 [shape = 's32[1]{0}', space=sflag, size = 0x4, scoped, tag = 'scoped memory for tpu_custom_call.1']
    #allocation8 [shape = 's32[1]{0}', space=sflag, size = 0x4, scoped, tag = 'scoped memory for tpu_custom_call.1']
    #allocation9 [shape = 'u8[262144]{0}', space=vmem, size = 0x40000, scoped, tag = 'input window, operand 2, single buffered']
    #allocation10 [shape = 's32[1]{0}', space=sflag, size = 0x4, scoped, tag = 'scoped memory for tpu_custom_call.1']
    #allocation11 [shape = 'u8[4096]{0}', space=vmem, size = 0x1000, scoped, tag = 'output window, operand 0, single buffered']
    %13 = vsyncpa [#allocation7], 0
    %14 = vsyncpa [#allocation10], 0
    %15 = vsyncpa [#allocation8], 0
    // Predicated region
    $region2: #{tpu_custom_call.1} parent=1 // pred_check
      _
    $region3: #{tpu_custom_call.1} parent=1 // pred_check_branch
      %17 = sbr.rel (0) target = $region5
    $region4: #{tpu_custom_call.1} parent=1 // pred_region
      %19 = vsyncadd [#allocation7], 0
      %s20 = sshll.u32 %s0, 4
      %s21 = int_to_ptr.hbm [resolvable:$true] %s20
      %s22 = sshll.u32 [#allocation6], 4
      %s23 = int_to_ptr.vmem [resolvable:$true] %s22
      %28 = dma.hbm_to_vmem [thread:$0]  %s21, 1024, %s23, [#allocation7], 128, 128, 8
    $region5: #{tpu_custom_call.1} parent=1 // pred_fallthru
      _
    // Predicated region
    $region6: #{tpu_custom_call.1} parent=1 // pred_check
      _
    $region7: #{tpu_custom_call.1} parent=1 // pred_check_branch
      %30 = sbr.rel (0) target = $region9
    $region8: #{tpu_custom_call.1} parent=1 // pred_region
      _
    $region9: #{tpu_custom_call.1} parent=1 // pred_fallthru
      _
    // Predicated region
    $region10: #{tpu_custom_call.1} parent=1 // pred_check
      _
    $region11: #{tpu_custom_call.1} parent=1 // pred_check_branch
      %32 = sbr.rel (0) target = $region13
    $region12: #{tpu_custom_call.1} parent=1 // pred_region
      %34 = vsyncadd [#allocation10], 0
      %s35 = sshll.u32 %s2, 4
      %s36 = int_to_ptr.hbm [resolvable:$true] %s35
      %s37 = sshll.u32 [#allocation9], 4
      %s38 = int_to_ptr.vmem [resolvable:$true] %s37
      %43 = dma.hbm_to_vmem [thread:$0]  %s36, 8192, %s38, [#allocation10], 512, 512, 32
    $region13: #{tpu_custom_call.1} parent=1 // pred_fallthru
      _
    // Predicated region
    $region14: #{tpu_custom_call.1} parent=1 // pred_check
      _
    $region15: #{tpu_custom_call.1} parent=1 // pred_check_branch
      %45 = sbr.rel (0) target = $region17
    $region16: #{tpu_custom_call.1} parent=1 // pred_region
      _
    $region17: #{tpu_custom_call.1} parent=1 // pred_fallthru
      _
    // Predicated region
    $region18: #{tpu_custom_call.1} parent=1 // pred_check
      _
    $region19: #{tpu_custom_call.1} parent=1 // pred_check_branch
      %47 = sbr.rel (0) target = $region21
    $region20: #{tpu_custom_call.1} parent=1 // pred_region
      _
    $region21: #{tpu_custom_call.1} parent=1 // pred_fallthru
      _
    // Predicated region
    $region22: #{tpu_custom_call.1} parent=1 // pred_check
      _
    $region23: #{tpu_custom_call.1} parent=1 // pred_check_branch
      %49 = sbr.rel (0) target = $region25
    $region24: #{tpu_custom_call.1} parent=1 // pred_region
      _
    $region25: #{tpu_custom_call.1} parent=1 // pred_fallthru
      _
    // Predicated region
    $region26: #{tpu_custom_call.1} parent=1 // pred_check
      _
    $region27: #{tpu_custom_call.1} parent=1 // pred_check_branch
      %51 = sbr.rel (0) target = $region29
    $region28: #{tpu_custom_call.1} parent=1 // pred_region
      %53 = dma.done [#allocation7], 1024
    $region29: #{tpu_custom_call.1} parent=1 // pred_fallthru
      _
    // Predicated region
    $region30: #{tpu_custom_call.1} parent=1 // pred_check
      _
    $region31: #{tpu_custom_call.1} parent=1 // pred_check_branch
      %55 = sbr.rel (0) target = $region33
    $region32: #{tpu_custom_call.1} parent=1 // pred_region
      %57 = dma.done [#allocation10], 8192
    $region33: #{tpu_custom_call.1} parent=1 // pred_fallthru
      _
    %v58 = vld [vmem:[#allocation6] sm:$0xff]
    %v59 = vld [vmem:[#allocation6 + $0x8] sm:$0xff]
    %v60 = vld [vmem:[#allocation6 + $0x10] sm:$0xff]
    %v61 = vld [vmem:[#allocation6 + $0x18] sm:$0xff]
    %v62 = vld [vmem:[#allocation6 + $0x20] sm:$0xff]
    %v63 = vld [vmem:[#allocation6 + $0x28] sm:$0xff]
    %v64 = vld [vmem:[#allocation6 + $0x30] sm:$0xff]
    %v65 = vld [vmem:[#allocation6 + $0x38] sm:$0xff]
    %v66 = vld [vmem:[%s1] sm:$0xff]
    %v67 = vld [vmem:[%s1 + $0x8] sm:$0xff]
    %v68 = vld [vmem:[%s1 + $0x10] sm:$0xff]
    %v69 = vld [vmem:[%s1 + $0x18] sm:$0xff]
    %v70 = vld [vmem:[%s1 + $0x20] sm:$0xff]
    %v71 = vld [vmem:[%s1 + $0x28] sm:$0xff]
    %v72 = vld [vmem:[%s1 + $0x30] sm:$0xff]
    %v73 = vld [vmem:[%s1 + $0x38] sm:$0xff]
    %v74 = vld [vmem:[%s1 + $0x40] sm:$0xf]
    %v75 = vld [vmem:[%s1 + $0x48] sm:$0xf]
    %v76 = vld [vmem:[%s1 + $0x50] sm:$0xf]
    %v77 = vld [vmem:[%s1 + $0x58] sm:$0xf]
    %v78 = vld [vmem:[%s3] sm:$0xf]
    %v80 = vperm.slane %v78, 0
    %v81 = vperm.slane %v78, 1
    %v82 = vperm.slane %v78, 2
    %v83 = vperm.slane %v78, 3
    %vm88 = vcmask 162816
    %v90 = vsel %vm88, %v58, 0
    %v93 = vsel %vm88, %v59, 0
    %v96 = vsel %vm88, %v60, 0
    %v99 = vsel %vm88, %v61, 0
    %v102 = vsel %vm88, %v62, 0
    %v105 = vsel %vm88, %v63, 0
    %v108 = vsel %vm88, %v64, 0
    %v111 = vsel %vm88, %v65, 0
    %vm113 = vcmask 1043456
    %v115 = vsel %vm113, %v74, 0
    %v118 = vsel %vm113, %v75, 0
    %v121 = vsel %vm113, %v76, 0
    %v124 = vsel %vm113, %v77, 0
    %126 = vmatpush.msra.mxu0 0.0
    %127 = vmatpush.msra.mxu0 0.0
    %128 = vmatpush.msra.mxu0 0.0
    %129 = vmatpush.msra.mxu0 0.0
    %130 = vmatpush.msra.mxu0 0.0
    %131 = vmatpush.msra.mxu0 0.0
    %132 = vmatpush.msra.mxu0 0.0
    %133 = vmatpush.msra.mxu0 0.0
    %134 = vmatpush.msra.mxu0 0.0
    %135 = vmatpush.msra.mxu0 0.0
    %136 = vmatpush.msra.mxu0 0.0
    %137 = vmatpush.msra.mxu0 0.0
    %138 = vmatpush.msra.mxu0 0.0
    %139 = vmatpush.msra.mxu0 %v115
    %140 = vmatpush.msra.mxu0 %v70
    %141 = vmatpush.msra.mxu0 %v66
    %142 = vmatmul.f32.gmra.mxu0 %v90
    %v143 = vpop.f32.mrf.mxu0
    %v144 = vadd.f32 %v80, %v143
    %145 = vmatmul.f32.gmra.mxu0 %v93
    %v146 = vpop.f32.mrf.mxu0
    %v147 = vadd.f32 %v80, %v146
    %148 = vmatmul.f32.gmra.mxu0 %v96
    %v149 = vpop.f32.mrf.mxu0
    %v150 = vadd.f32 %v80, %v149
    %151 = vmatmul.f32.gmra.mxu0 %v99
    %v152 = vpop.f32.mrf.mxu0
    %v153 = vadd.f32 %v80, %v152
    %154 = vmatmul.f32.gmra.mxu0 %v102
    %v155 = vpop.f32.mrf.mxu0
    %v156 = vadd.f32 %v80, %v155
    %157 = vmatmul.f32.gmra.mxu0 %v105
    %v158 = vpop.f32.mrf.mxu0
    %v159 = vadd.f32 %v80, %v158
    %160 = vmatmul.f32.gmra.mxu0 %v108
    %v161 = vpop.f32.mrf.mxu0
    %v162 = vadd.f32 %v80, %v161
    %163 = vmatmul.f32.gmra.mxu0 %v111
    %v164 = vpop.f32.mrf.mxu0
    %v165 = vadd.f32 %v80, %v164
    %166 = vdwg.mxu0
    %167 = vmatpush.msra.mxu0 0.0
    %168 = vmatpush.msra.mxu0 0.0
    %169 = vmatpush.msra.mxu0 0.0
    %170 = vmatpush.msra.mxu0 0.0
    %171 = vmatpush.msra.mxu0 0.0
    %172 = vmatpush.msra.mxu0 0.0
    %173 = vmatpush.msra.mxu0 0.0
    %174 = vmatpush.msra.mxu0 0.0
    %175 = vmatpush.msra.mxu0 0.0
    %176 = vmatpush.msra.mxu0 0.0
    %177 = vmatpush.msra.mxu0 0.0
    %178 = vmatpush.msra.mxu0 0.0
    %179 = vmatpush.msra.mxu0 0.0
    %180 = vmatpush.msra.mxu0 %v118
    %181 = vmatpush.msra.mxu0 %v71
    %182 = vmatpush.msra.mxu0 %v67
    %183 = vmatmul.f32.gmra.mxu0 %v90
    %v184 = vpop.f32.mrf.mxu0
    %v185 = vadd.f32 %v81, %v184
    %186 = vmatmul.f32.gmra.mxu0 %v93
    %v187 = vpop.f32.mrf.mxu0
    %v188 = vadd.f32 %v81, %v187
    %189 = vmatmul.f32.gmra.mxu0 %v96
    %v190 = vpop.f32.mrf.mxu0
    %v191 = vadd.f32 %v81, %v190
    %192 = vmatmul.f32.gmra.mxu0 %v99
    %v193 = vpop.f32.mrf.mxu0
    %v194 = vadd.f32 %v81, %v193
    %195 = vmatmul.f32.gmra.mxu0 %v102
    %v196 = vpop.f32.mrf.mxu0
    %v197 = vadd.f32 %v81, %v196
    %198 = vmatmul.f32.gmra.mxu0 %v105
    %v199 = vpop.f32.mrf.mxu0
    %v200 = vadd.f32 %v81, %v199
    %201 = vmatmul.f32.gmra.mxu0 %v108
    %v202 = vpop.f32.mrf.mxu0
    %v203 = vadd.f32 %v81, %v202
    %204 = vmatmul.f32.gmra.mxu0 %v111
    %v205 = vpop.f32.mrf.mxu0
    %v206 = vadd.f32 %v81, %v205
    %207 = vdwg.mxu0
    %208 = vmatpush.msra.mxu0 0.0
    %209 = vmatpush.msra.mxu0 0.0
    %210 = vmatpush.msra.mxu0 0.0
    %211 = vmatpush.msra.mxu0 0.0
    %212 = vmatpush.msra.mxu0 0.0
    %213 = vmatpush.msra.mxu0 0.0
    %214 = vmatpush.msra.mxu0 0.0
    %215 = vmatpush.msra.mxu0 0.0
    %216 = vmatpush.msra.mxu0 0.0
    %217 = vmatpush.msra.mxu0 0.0
    %218 = vmatpush.msra.mxu0 0.0
    %219 = vmatpush.msra.mxu0 0.0
    %220 = vmatpush.msra.mxu0 0.0
    %221 = vmatpush.msra.mxu0 %v121
    %222 = vmatpush.msra.mxu0 %v72
    %223 = vmatpush.msra.mxu0 %v68
    %224 = vmatmul.f32.gmra.mxu0 %v90
    %v225 = vpop.f32.mrf.mxu0
    %v226 = vadd.f32 %v82, %v225
    %227 = vmatmul.f32.gmra.mxu0 %v93
    %v228 = vpop.f32.mrf.mxu0
    %v229 = vadd.f32 %v82, %v228
    %230 = vmatmul.f32.gmra.mxu0 %v96
    %v231 = vpop.f32.mrf.mxu0
    %v232 = vadd.f32 %v82, %v231
    %233 = vmatmul.f32.gmra.mxu0 %v99
    %v234 = vpop.f32.mrf.mxu0
    %v235 = vadd.f32 %v82, %v234
    %236 = vmatmul.f32.gmra.mxu0 %v102
    %v237 = vpop.f32.mrf.mxu0
    %v238 = vadd.f32 %v82, %v237
    %239 = vmatmul.f32.gmra.mxu0 %v105
    %v240 = vpop.f32.mrf.mxu0
    %v241 = vadd.f32 %v82, %v240
    %242 = vmatmul.f32.gmra.mxu0 %v108
    %v243 = vpop.f32.mrf.mxu0
    %v244 = vadd.f32 %v82, %v243
    %245 = vmatmul.f32.gmra.mxu0 %v111
    %v246 = vpop.f32.mrf.mxu0
    %v247 = vadd.f32 %v82, %v246
    %248 = vdwg.mxu0
    %249 = vmatpush.msra.mxu0 0.0
    %250 = vmatpush.msra.mxu0 0.0
    %251 = vmatpush.msra.mxu0 0.0
    %252 = vmatpush.msra.mxu0 0.0
    %253 = vmatpush.msra.mxu0 0.0
    %254 = vmatpush.msra.mxu0 0.0
    %255 = vmatpush.msra.mxu0 0.0
    %256 = vmatpush.msra.mxu0 0.0
    %257 = vmatpush.msra.mxu0 0.0
    %258 = vmatpush.msra.mxu0 0.0
    %259 = vmatpush.msra.mxu0 0.0
    %260 = vmatpush.msra.mxu0 0.0
    %261 = vmatpush.msra.mxu0 0.0
    %262 = vmatpush.msra.mxu0 %v124
    %263 = vmatpush.msra.mxu0 %v73
    %264 = vmatpush.msra.mxu0 %v69
    %265 = vmatmul.f32.gmra.mxu0 %v90
    %v266 = vpop.f32.mrf.mxu0
    %v267 = vadd.f32 %v83, %v266
    %268 = vmatmul.f32.gmra.mxu0 %v93
    %v269 = vpop.f32.mrf.mxu0
    %v270 = vadd.f32 %v83, %v269
    %271 = vmatmul.f32.gmra.mxu0 %v96
    %v272 = vpop.f32.mrf.mxu0
    %v273 = vadd.f32 %v83, %v272
    %274 = vmatmul.f32.gmra.mxu0 %v99
    %v275 = vpop.f32.mrf.mxu0
    %v276 = vadd.f32 %v83, %v275
    %277 = vmatmul.f32.gmra.mxu0 %v102
    %v278 = vpop.f32.mrf.mxu0
    %v279 = vadd.f32 %v83, %v278
    %280 = vmatmul.f32.gmra.mxu0 %v105
    %v281 = vpop.f32.mrf.mxu0
    %v282 = vadd.f32 %v83, %v281
    %283 = vmatmul.f32.gmra.mxu0 %v108
    %v284 = vpop.f32.mrf.mxu0
    %v285 = vadd.f32 %v83, %v284
    %286 = vmatmul.f32.gmra.mxu0 %v111
    %v287 = vpop.f32.mrf.mxu0
    %v288 = vadd.f32 %v83, %v287
    %289 = vdwg.mxu0
    %290 = vst [vmem:[#allocation2] sm:$0xff] %v144
    %291 = vst [vmem:[#allocation2 + $0x8] sm:$0xff] %v185
    %292 = vst [vmem:[#allocation2 + $0x10] sm:$0xff] %v226
    %293 = vst [vmem:[#allocation2 + $0x18] sm:$0xff] %v267
    %294 = vst [vmem:[#allocation2 + $0x20] sm:$0xff] %v147
    %295 = vst [vmem:[#allocation2 + $0x28] sm:$0xff] %v188
    %296 = vst [vmem:[#allocation2 + $0x30] sm:$0xff] %v229
    %297 = vst [vmem:[#allocation2 + $0x38] sm:$0xff] %v270
    %298 = vst [vmem:[#allocation2 + $0x40] sm:$0xff] %v150
    %299 = vst [vmem:[#allocation2 + $0x48] sm:$0xff] %v191
    %300 = vst [vmem:[#allocation2 + $0x50] sm:$0xff] %v232
    %301 = vst [vmem:[#allocation2 + $0x58] sm:$0xff] %v273
    %302 = vst [vmem:[#allocation2 + $0x60] sm:$0xff] %v153
    %303 = vst [vmem:[#allocation2 + $0x68] sm:$0xff] %v194
    %304 = vst [vmem:[#allocation2 + $0x70] sm:$0xff] %v235
    %305 = vst [vmem:[#allocation2 + $0x78] sm:$0xff] %v276
    %306 = vst [vmem:[#allocation2 + $0x80] sm:$0xff] %v156
    %307 = vst [vmem:[#allocation2 + $0x88] sm:$0xff] %v197
    %308 = vst [vmem:[#allocation2 + $0x90] sm:$0xff] %v238
    %309 = vst [vmem:[#allocation2 + $0x98] sm:$0xff] %v279
    %310 = vst [vmem:[#allocation2 + $0xa0] sm:$0xff] %v159
    %311 = vst [vmem:[#allocation2 + $0xa8] sm:$0xff] %v200
    %312 = vst [vmem:[#allocation2 + $0xb0] sm:$0xff] %v241
    %313 = vst [vmem:[#allocation2 + $0xb8] sm:$0xff] %v282
    %314 = vst [vmem:[#allocation2 + $0xc0] sm:$0xff] %v162
    %315 = vst [vmem:[#allocation2 + $0xc8] sm:$0xff] %v203
    %316 = vst [vmem:[#allocation2 + $0xd0] sm:$0xff] %v244
    %317 = vst [vmem:[#allocation2 + $0xd8] sm:$0xff] %v285
    %318 = vst [vmem:[#allocation2 + $0xe0] sm:$0xff] %v165
    %319 = vst [vmem:[#allocation2 + $0xe8] sm:$0xff] %v206
    %320 = vst [vmem:[#allocation2 + $0xf0] sm:$0xff] %v247
    %321 = vst [vmem:[#allocation2 + $0xf8] sm:$0xff] %v288
    %v322 = vld [vmem:[#allocation9] sm:$0xff]
    %v323 = vld [vmem:[#allocation9 + $0x8] sm:$0xff]
    %v324 = vld [vmem:[#allocation9 + $0x10] sm:$0xff]
    %v325 = vld [vmem:[#allocation9 + $0x18] sm:$0xff]
    %v326 = vld [vmem:[#allocation9 + $0x20] sm:$0xff]
    %v327 = vld [vmem:[#allocation9 + $0x28] sm:$0xff]
    %v328 = vld [vmem:[#allocation9 + $0x30] sm:$0xff]
    %v329 = vld [vmem:[#allocation9 + $0x38] sm:$0xff]
    %v330 = vld [vmem:[#allocation9 + $0x40] sm:$0xff]
    %v331 = vld [vmem:[#allocation9 + $0x48] sm:$0xff]
    %v332 = vld [vmem:[#allocation9 + $0x50] sm:$0xff]
    %v333 = vld [vmem:[#allocation9 + $0x58] sm:$0xff]
    %v334 = vld [vmem:[#allocation9 + $0x60] sm:$0xff]
    %v335 = vld [vmem:[#allocation9 + $0x68] sm:$0xff]
    %v336 = vld [vmem:[#allocation9 + $0x70] sm:$0xff]
    %v337 = vld [vmem:[#allocation9 + $0x78] sm:$0xff]
    %v338 = vld [vmem:[#allocation9 + $0x80] sm:$0xff]
    %v339 = vld [vmem:[#allocation9 + $0x88] sm:$0xff]
    %v340 = vld [vmem:[#allocation9 + $0x90] sm:$0xff]
    %v341 = vld [vmem:[#allocation9 + $0x98] sm:$0xff]
    %v342 = vld [vmem:[#allocation9 + $0xa0] sm:$0xff]
    %v343 = vld [vmem:[#allocation9 + $0xa8] sm:$0xff]
    %v344 = vld [vmem:[#allocation9 + $0xb0] sm:$0xff]
    %v345 = vld [vmem:[#allocation9 + $0xb8] sm:$0xff]
    %v346 = vld [vmem:[#allocation9 + $0xc0] sm:$0xff]
    %v347 = vld [vmem:[#allocation9 + $0xc8] sm:$0xff]
    %v348 = vld [vmem:[#allocation9 + $0xd0] sm:$0xff]
    %v349 = vld [vmem:[#allocation9 + $0xd8] sm:$0xff]
    %v350 = vld [vmem:[#allocation9 + $0xe0] sm:$0xff]
    %v351 = vld [vmem:[#allocation9 + $0xe8] sm:$0xff]
    %v352 = vld [vmem:[#allocation9 + $0xf0] sm:$0xff]
    %v353 = vld [vmem:[#allocation9 + $0xf8] sm:$0xff]
    %v354 = vld [vmem:[#allocation9 + $0x100] sm:$0xff]
    %v355 = vld [vmem:[#allocation9 + $0x108] sm:$0xff]
    %v356 = vld [vmem:[#allocation9 + $0x110] sm:$0xff]
    %v357 = vld [vmem:[#allocation9 + $0x118] sm:$0xff]
    %v358 = vld [vmem:[#allocation9 + $0x120] sm:$0xff]
    %v359 = vld [vmem:[#allocation9 + $0x128] sm:$0xff]
    %v360 = vld [vmem:[#allocation9 + $0x130] sm:$0xff]
    %v361 = vld [vmem:[#allocation9 + $0x138] sm:$0xff]
    %v362 = vld [vmem:[#allocation9 + $0x140] sm:$0xff]
    %v363 = vld [vmem:[#allocation9 + $0x148] sm:$0xff]
    %v364 = vld [vmem:[#allocation9 + $0x150] sm:$0xff]
    %v365 = vld [vmem:[#allocation9 + $0x158] sm:$0xff]
    %v366 = vld [vmem:[#allocation9 + $0x160] sm:$0xff]
    %v367 = vld [vmem:[#allocation9 + $0x168] sm:$0xff]
    %v368 = vld [vmem:[#allocation9 + $0x170] sm:$0xff]
    %v369 = vld [vmem:[#allocation9 + $0x178] sm:$0xff]
    %v370 = vld [vmem:[#allocation9 + $0x180] sm:$0xff]
    %v371 = vld [vmem:[#allocation9 + $0x188] sm:$0xff]
    %v372 = vld [vmem:[#allocation9 + $0x190] sm:$0xff]
    %v373 = vld [vmem:[#allocation9 + $0x198] sm:$0xff]
    %v374 = vld [vmem:[#allocation9 + $0x1a0] sm:$0xff]
    %v375 = vld [vmem:[#allocation9 + $0x1a8] sm:$0xff]
    %v376 = vld [vmem:[#allocation9 + $0x1b0] sm:$0xff]
    %v377 = vld [vmem:[#allocation9 + $0x1b8] sm:$0xff]
    %v378 = vld [vmem:[#allocation9 + $0x1c0] sm:$0xff]
    %v379 = vld [vmem:[#allocation9 + $0x1c8] sm:$0xff]
    %v380 = vld [vmem:[#allocation9 + $0x1d0] sm:$0xff]
    %v381 = vld [vmem:[#allocation9 + $0x1d8] sm:$0xff]
    %v382 = vld [vmem:[#allocation9 + $0x1e0] sm:$0xff]
    %v383 = vld [vmem:[#allocation9 + $0x1e8] sm:$0xff]
    %v384 = vld [vmem:[#allocation9 + $0x1f0] sm:$0xff]
    %v385 = vld [vmem:[#allocation9 + $0x1f8] sm:$0xff]
    %v386 = vld [vmem:[#allocation2] sm:$0xff]
    %v387 = vld [vmem:[#allocation2 + $0x8] sm:$0xff]
    %v388 = vld [vmem:[#allocation2 + $0x10] sm:$0xff]
    %v389 = vld [vmem:[#allocation2 + $0x18] sm:$0xff]
    %390 = vmatpush.msra.mxu0 %v382
    %391 = vmatpush.msra.mxu0 %v378
    %392 = vmatpush.msra.mxu0 %v374
    %393 = vmatpush.msra.mxu0 %v370
    %394 = vmatpush.msra.mxu0 %v366
    %395 = vmatpush.msra.mxu0 %v362
    %396 = vmatpush.msra.mxu0 %v358
    %397 = vmatpush.msra.mxu0 %v354
    %398 = vmatpush.msra.mxu0 %v350
    %399 = vmatpush.msra.mxu0 %v346
    %400 = vmatpush.msra.mxu0 %v342
    %401 = vmatpush.msra.mxu0 %v338
    %402 = vmatpush.msra.mxu0 %v334
    %403 = vmatpush.msra.mxu0 %v330
    %404 = vmatpush.msra.mxu0 %v326
    %405 = vmatpush.msra.mxu0 %v322
    %406 = vmatmul.f32.gmra.mxu0 0.0
    %v407 = vpop.f32.mrf.mxu0
    %v408 = vadd.f32 0.0, %v407
    %409 = vdwg.mxu0
    %410 = vmatpush.msra.mxu0 %v383
    %411 = vmatpush.msra.mxu0 %v379
    %412 = vmatpush.msra.mxu0 %v375
    %413 = vmatpush.msra.mxu0 %v371
    %414 = vmatpush.msra.mxu0 %v367
    %415 = vmatpush.msra.mxu0 %v363
    %416 = vmatpush.msra.mxu0 %v359
    %417 = vmatpush.msra.mxu0 %v355
    %418 = vmatpush.msra.mxu0 %v351
    %419 = vmatpush.msra.mxu0 %v347
    %420 = vmatpush.msra.mxu0 %v343
    %421 = vmatpush.msra.mxu0 %v339
    %422 = vmatpush.msra.mxu0 %v335
    %423 = vmatpush.msra.mxu0 %v331
    %424 = vmatpush.msra.mxu0 %v327
    %425 = vmatpush.msra.mxu0 %v323
    %426 = vmatmul.f32.gmra.mxu0 0.0
    %v427 = vpop.f32.mrf.mxu0
    %v428 = vadd.f32 0.0, %v427
    %429 = vdwg.mxu0
    %430 = vmatpush.msra.mxu0 %v384
    %431 = vmatpush.msra.mxu0 %v380
    %432 = vmatpush.msra.mxu0 %v376
    %433 = vmatpush.msra.mxu0 %v372
    %434 = vmatpush.msra.mxu0 %v368
    %435 = vmatpush.msra.mxu0 %v364
    %436 = vmatpush.msra.mxu0 %v360
    %437 = vmatpush.msra.mxu0 %v356
    %438 = vmatpush.msra.mxu0 %v352
    %439 = vmatpush.msra.mxu0 %v348
    %440 = vmatpush.msra.mxu0 %v344
    %441 = vmatpush.msra.mxu0 %v340
    %442 = vmatpush.msra.mxu0 %v336
    %443 = vmatpush.msra.mxu0 %v332
    %444 = vmatpush.msra.mxu0 %v328
    %445 = vmatpush.msra.mxu0 %v324
    %446 = vmatmul.f32.gmra.mxu0 0.0
    %v447 = vpop.f32.mrf.mxu0
    %v448 = vadd.f32 0.0, %v447
    %449 = vdwg.mxu0
    %450 = vmatpush.msra.mxu0 %v385
    %451 = vmatpush.msra.mxu0 %v381
    %452 = vmatpush.msra.mxu0 %v377
    %453 = vmatpush.msra.mxu0 %v373
    %454 = vmatpush.msra.mxu0 %v369
    %455 = vmatpush.msra.mxu0 %v365
    %456 = vmatpush.msra.mxu0 %v361
    %457 = vmatpush.msra.mxu0 %v357
    %458 = vmatpush.msra.mxu0 %v353
    %459 = vmatpush.msra.mxu0 %v349
    %460 = vmatpush.msra.mxu0 %v345
    %461 = vmatpush.msra.mxu0 %v341
    %462 = vmatpush.msra.mxu0 %v337
    %463 = vmatpush.msra.mxu0 %v333
    %464 = vmatpush.msra.mxu0 %v329
    %465 = vmatpush.msra.mxu0 %v325
    %466 = vmatmul.f32.gmra.mxu0 0.0
    %v467 = vpop.f32.mrf.mxu0
    %v468 = vadd.f32 0.0, %v467
    %469 = vdwg.mxu0
    %v470 = vadd.f32 %v386, %v408
    %v471 = vadd.f32 %v387, %v428
    %v472 = vadd.f32 %v388, %v448
    %v473 = vadd.f32 %v389, %v468
    %v474 = vxor.u32 %v470, 2147483648
    %v475 = vmul.f32 %v474, 1.442695
    %v476 = vpow.pop %v475
    %v477 = vadd.f32 %v476, 1.0
    %v478 = vrcp.pop %v477
    %v479 = vmul.f32 %v477, %v478
    %v480 = vsub.f32 1.0, %v479
    %v481 = vmul.f32 %v478, %v480
    %v482 = vadd.f32 %v478, %v481
    %vm483 = vweird.f32 %v477
    %vm484 = vweird.f32 %v478
    %vm485 = vmor %vm483, %vm484
    %v486 = vsel %vm485, %v478, %v482
    %v487 = vand.u32 2147483647, %v477
    %vm488 = vcmp.eq.f32.partialorder %v487, 8.507059e+37
    %v489 = vand.u32 %v477, 2147483648
    %v490 = vor.u32 1.1754944e-38, %v489
    %v491 = vsel %vm488, %v490, %v486
    %v492 = vmul.f32 1.0, %v491
    %v493 = vxor.u32 %v471, 2147483648
    %v494 = vmul.f32 %v493, 1.442695
    %v495 = vpow.pop %v494
    %v496 = vadd.f32 %v495, 1.0
    %v497 = vrcp.pop %v496
    %v498 = vmul.f32 %v496, %v497
    %v499 = vsub.f32 1.0, %v498
    %v500 = vmul.f32 %v497, %v499
    %v501 = vadd.f32 %v497, %v500
    %vm502 = vweird.f32 %v496
    %vm503 = vweird.f32 %v497
    %vm504 = vmor %vm502, %vm503
    %v505 = vsel %vm504, %v497, %v501
    %v506 = vand.u32 2147483647, %v496
    %vm507 = vcmp.eq.f32.partialorder %v506, 8.507059e+37
    %v508 = vand.u32 %v496, 2147483648
    %v509 = vor.u32 1.1754944e-38, %v508
    %v510 = vsel %vm507, %v509, %v505
    %v511 = vmul.f32 1.0, %v510
    %v512 = vtanh.pop %v472
    %v513 = vxor.u32 %v473, 2147483648
    %v514 = vmul.f32 %v513, 1.442695
    %v515 = vpow.pop %v514
    %v516 = vadd.f32 %v515, 1.0
    %v517 = vrcp.pop %v516
    %v518 = vmul.f32 %v516, %v517
    %v519 = vsub.f32 1.0, %v518
    %v520 = vmul.f32 %v517, %v519
    %v521 = vadd.f32 %v517, %v520
    %vm522 = vweird.f32 %v516
    %vm523 = vweird.f32 %v517
    %vm524 = vmor %vm522, %vm523
    %v525 = vsel %vm524, %v517, %v521
    %v526 = vand.u32 2147483647, %v516
    %vm527 = vcmp.eq.f32.partialorder %v526, 8.507059e+37
    %v528 = vand.u32 %v516, 2147483648
    %v529 = vor.u32 1.1754944e-38, %v528
    %v530 = vsel %vm527, %v529, %v525
    %v531 = vmul.f32 1.0, %v530
    %v532 = vmul.f32 %v511, 0.0
    %v533 = vmul.f32 %v492, %v512
    %v534 = vadd.f32 %v532, %v533
    %v535 = vtanh.pop %v534
    %v536 = vmul.f32 %v531, %v535
    %537 = vst [vmem:[#allocation3] sm:$0xff] %v536
    %s538 = scalar_lea.vmem [#allocation4], 56
    %539 = vst [vmem:[%s538] sm:$0xff] %v536
    %s540 = scalar_lea.vmem [#allocation2], 32
    %v541 = vld [vmem:[%s540] sm:$0xff]
    %v542 = vld [vmem:[%s540 + $0x8] sm:$0xff]
    %v543 = vld [vmem:[%s540 + $0x10] sm:$0xff]
    %v544 = vld [vmem:[%s540 + $0x18] sm:$0xff]
    %545 = vmatpush.msra.mxu0 %v382
    %546 = vmatpush.msra.mxu0 %v378
    %547 = vmatpush.msra.mxu0 %v374
    %548 = vmatpush.msra.mxu0 %v370
    %549 = vmatpush.msra.mxu0 %v366
    %550 = vmatpush.msra.mxu0 %v362
    %551 = vmatpush.msra.mxu0 %v358
    %552 = vmatpush.msra.mxu0 %v354
    %553 = vmatpush.msra.mxu0 %v350
    %554 = vmatpush.msra.mxu0 %v346
    %555 = vmatpush.msra.mxu0 %v342
    %556 = vmatpush.msra.mxu0 %v338
    %557 = vmatpush.msra.mxu0 %v334
    %558 = vmatpush.msra.mxu0 %v330
    %559 = vmatpush.msra.mxu0 %v326
    %560 = vmatpush.msra.mxu0 %v322
    %561 = vmatmul.f32.gmra.mxu0 %v536
    %v562 = vpop.f32.mrf.mxu0
    %v563 = vadd.f32 0.0, %v562
    %564 = vdwg.mxu0
    %565 = vmatpush.msra.mxu0 %v383
    %566 = vmatpush.msra.mxu0 %v379
    %567 = vmatpush.msra.mxu0 %v375
    %568 = vmatpush.msra.mxu0 %v371
    %569 = vmatpush.msra.mxu0 %v367
    %570 = vmatpush.msra.mxu0 %v363
    %571 = vmatpush.msra.mxu0 %v359
    %572 = vmatpush.msra.mxu0 %v355
    %573 = vmatpush.msra.mxu0 %v351
    %574 = vmatpush.msra.mxu0 %v347
    %575 = vmatpush.msra.mxu0 %v343
    %576 = vmatpush.msra.mxu0 %v339
    %577 = vmatpush.msra.mxu0 %v335
    %578 = vmatpush.msra.mxu0 %v331
    %579 = vmatpush.msra.mxu0 %v327
    %580 = vmatpush.msra.mxu0 %v323
    %581 = vmatmul.f32.gmra.mxu0 %v536
    %v582 = vpop.f32.mrf.mxu0
    %v583 = vadd.f32 0.0, %v582
    %584 = vdwg.mxu0
    %585 = vmatpush.msra.mxu0 %v384
    %586 = vmatpush.msra.mxu0 %v380
    %587 = vmatpush.msra.mxu0 %v376
    %588 = vmatpush.msra.mxu0 %v372
    %589 = vmatpush.msra.mxu0 %v368
    %590 = vmatpush.msra.mxu0 %v364
    %591 = vmatpush.msra.mxu0 %v360
    %592 = vmatpush.msra.mxu0 %v356
    %593 = vmatpush.msra.mxu0 %v352
    %594 = vmatpush.msra.mxu0 %v348
    %595 = vmatpush.msra.mxu0 %v344
    %596 = vmatpush.msra.mxu0 %v340
    %597 = vmatpush.msra.mxu0 %v336
    %598 = vmatpush.msra.mxu0 %v332
    %599 = vmatpush.msra.mxu0 %v328
    %600 = vmatpush.msra.mxu0 %v324
    %601 = vmatmul.f32.gmra.mxu0 %v536
    %v602 = vpop.f32.mrf.mxu0
    %v603 = vadd.f32 0.0, %v602
    %604 = vdwg.mxu0
    %605 = vmatpush.msra.mxu0 %v385
    %606 = vmatpush.msra.mxu0 %v381
    %607 = vmatpush.msra.mxu0 %v377
    %608 = vmatpush.msra.mxu0 %v373
    %609 = vmatpush.msra.mxu0 %v369
    %610 = vmatpush.msra.mxu0 %v365
    %611 = vmatpush.msra.mxu0 %v361
    %612 = vmatpush.msra.mxu0 %v357
    %613 = vmatpush.msra.mxu0 %v353
    %614 = vmatpush.msra.mxu0 %v349
    %615 = vmatpush.msra.mxu0 %v345
    %616 = vmatpush.msra.mxu0 %v341
    %617 = vmatpush.msra.mxu0 %v337
    %618 = vmatpush.msra.mxu0 %v333
    %619 = vmatpush.msra.mxu0 %v329
    %620 = vmatpush.msra.mxu0 %v325
    %621 = vmatmul.f32.gmra.mxu0 %v536
    %v622 = vpop.f32.mrf.mxu0
    %v623 = vadd.f32 0.0, %v622
    %624 = vdwg.mxu0
    %v625 = vadd.f32 %v541, %v563
    %v626 = vadd.f32 %v542, %v583
    %v627 = vadd.f32 %v543, %v603
    %v628 = vadd.f32 %v544, %v623
    %v629 = vxor.u32 %v625, 2147483648
    %v630 = vmul.f32 %v629, 1.442695
    %v631 = vpow.pop %v630
    %v632 = vadd.f32 %v631, 1.0
    %v633 = vrcp.pop %v632
    %v634 = vmul.f32 %v632, %v633
    %v635 = vsub.f32 1.0, %v634
    %v636 = vmul.f32 %v633, %v635
    %v637 = vadd.f32 %v633, %v636
    %vm638 = vweird.f32 %v632
    %vm639 = vweird.f32 %v633
    %vm640 = vmor %vm638, %vm639
    %v641 = vsel %vm640, %v633, %v637
    %v642 = vand.u32 2147483647, %v632
    %vm643 = vcmp.eq.f32.partialorder %v642, 8.507059e+37
    %v644 = vand.u32 %v632, 2147483648
    %v645 = vor.u32 1.1754944e-38, %v644
    %v646 = vsel %vm643, %v645, %v641
    %v647 = vmul.f32 1.0, %v646
    %v648 = vxor.u32 %v626, 2147483648
    %v649 = vmul.f32 %v648, 1.442695
    %v650 = vpow.pop %v649
    %v651 = vadd.f32 %v650, 1.0
    %v652 = vrcp.pop %v651
    %v653 = vmul.f32 %v651, %v652
    %v654 = vsub.f32 1.0, %v653
    %v655 = vmul.f32 %v652, %v654
    %v656 = vadd.f32 %v652, %v655
    %vm657 = vweird.f32 %v651
    %vm658 = vweird.f32 %v652
    %vm659 = vmor %vm657, %vm658
    %v660 = vsel %vm659, %v652, %v656
    %v661 = vand.u32 2147483647, %v651
    %vm662 = vcmp.eq.f32.partialorder %v661, 8.507059e+37
    %v663 = vand.u32 %v651, 2147483648
    %v664 = vor.u32 1.1754944e-38, %v663
    %v665 = vsel %vm662, %v664, %v660
    %v666 = vmul.f32 1.0, %v665
    %v667 = vtanh.pop %v627
    %v668 = vxor.u32 %v628, 2147483648
    %v669 = vmul.f32 %v668, 1.442695
    %v670 = vpow.pop %v669
    %v671 = vadd.f32 %v670, 1.0
    %v672 = vrcp.pop %v671
    %v673 = vmul.f32 %v671, %v672
    %v674 = vsub.f32 1.0, %v673
    %v675 = vmul.f32 %v672, %v674
    %v676 = vadd.f32 %v672, %v675
    %vm677 = vweird.f32 %v671
    %vm678 = vweird.f32 %v672
    %vm679 = vmor %vm677, %vm678
    %v680 = vsel %vm679, %v672, %v676
    %v681 = vand.u32 2147483647, %v671
    %vm682 = vcmp.eq.f32.partialorder %v681, 8.507059e+37
    %v683 = vand.u32 %v671, 2147483648
    %v684 = vor.u32 1.1754944e-38, %v683
    %v685 = vsel %vm682, %v684, %v680
    %v686 = vmul.f32 1.0, %v685
    %v687 = vmul.f32 %v666, %v534
    %v688 = vmul.f32 %v647, %v667
    %v689 = vadd.f32 %v687, %v688
    %v690 = vtanh.pop %v689
    %v691 = vmul.f32 %v686, %v690
    %s692 = scalar_lea.vmem [#allocation3], 8
    %693 = vst [vmem:[%s692] sm:$0xff] %v691
    %s694 = scalar_lea.vmem [#allocation4], 48
    %695 = vst [vmem:[%s694] sm:$0xff] %v691
    %s696 = scalar_lea.vmem [#allocation2], 64
    %v697 = vld [vmem:[%s696] sm:$0xff]
    %v698 = vld [vmem:[%s696 + $0x8] sm:$0xff]
    %v699 = vld [vmem:[%s696 + $0x10] sm:$0xff]
    %v700 = vld [vmem:[%s696 + $0x18] sm:$0xff]
    %701 = vmatpush.msra.mxu0 %v382
    %702 = vmatpush.msra.mxu0 %v378
    %703 = vmatpush.msra.mxu0 %v374
    %704 = vmatpush.msra.mxu0 %v370
    %705 = vmatpush.msra.mxu0 %v366
    %706 = vmatpush.msra.mxu0 %v362
    %707 = vmatpush.msra.mxu0 %v358
    %708 = vmatpush.msra.mxu0 %v354
    %709 = vmatpush.msra.mxu0 %v350
    %710 = vmatpush.msra.mxu0 %v346
    %711 = vmatpush.msra.mxu0 %v342
    %712 = vmatpush.msra.mxu0 %v338
    %713 = vmatpush.msra.mxu0 %v334
    %714 = vmatpush.msra.mxu0 %v330
    %715 = vmatpush.msra.mxu0 %v326
    %716 = vmatpush.msra.mxu0 %v322
    %717 = vmatmul.f32.gmra.mxu0 %v691
    %v718 = vpop.f32.mrf.mxu0
    %v719 = vadd.f32 0.0, %v718
    %720 = vdwg.mxu0
    %721 = vmatpush.msra.mxu0 %v383
    %722 = vmatpush.msra.mxu0 %v379
    %723 = vmatpush.msra.mxu0 %v375
    %724 = vmatpush.msra.mxu0 %v371
    %725 = vmatpush.msra.mxu0 %v367
    %726 = vmatpush.msra.mxu0 %v363
    %727 = vmatpush.msra.mxu0 %v359
    %728 = vmatpush.msra.mxu0 %v355
    %729 = vmatpush.msra.mxu0 %v351
    %730 = vmatpush.msra.mxu0 %v347
    %731 = vmatpush.msra.mxu0 %v343
    %732 = vmatpush.msra.mxu0 %v339
    %733 = vmatpush.msra.mxu0 %v335
    %734 = vmatpush.msra.mxu0 %v331
    %735 = vmatpush.msra.mxu0 %v327
    %736 = vmatpush.msra.mxu0 %v323
    %737 = vmatmul.f32.gmra.mxu0 %v691
    %v738 = vpop.f32.mrf.mxu0
    %v739 = vadd.f32 0.0, %v738
    %740 = vdwg.mxu0
    %741 = vmatpush.msra.mxu0 %v384
    %742 = vmatpush.msra.mxu0 %v380
    %743 = vmatpush.msra.mxu0 %v376
    %744 = vmatpush.msra.mxu0 %v372
    %745 = vmatpush.msra.mxu0 %v368
    %746 = vmatpush.msra.mxu0 %v364
    %747 = vmatpush.msra.mxu0 %v360
    %748 = vmatpush.msra.mxu0 %v356
    %749 = vmatpush.msra.mxu0 %v352
    %750 = vmatpush.msra.mxu0 %v348
    %751 = vmatpush.msra.mxu0 %v344
    %752 = vmatpush.msra.mxu0 %v340
    %753 = vmatpush.msra.mxu0 %v336
    %754 = vmatpush.msra.mxu0 %v332
    %755 = vmatpush.msra.mxu0 %v328
    %756 = vmatpush.msra.mxu0 %v324
    %757 = vmatmul.f32.gmra.mxu0 %v691
    %v758 = vpop.f32.mrf.mxu0
    %v759 = vadd.f32 0.0, %v758
    %760 = vdwg.mxu0
    %761 = vmatpush.msra.mxu0 %v385
    %762 = vmatpush.msra.mxu0 %v381
    %763 = vmatpush.msra.mxu0 %v377
    %764 = vmatpush.msra.mxu0 %v373
    %765 = vmatpush.msra.mxu0 %v369
    %766 = vmatpush.msra.mxu0 %v365
    %767 = vmatpush.msra.mxu0 %v361
    %768 = vmatpush.msra.mxu0 %v357
    %769 = vmatpush.msra.mxu0 %v353
    %770 = vmatpush.msra.mxu0 %v349
    %771 = vmatpush.msra.mxu0 %v345
    %772 = vmatpush.msra.mxu0 %v341
    %773 = vmatpush.msra.mxu0 %v337
    %774 = vmatpush.msra.mxu0 %v333
    %775 = vmatpush.msra.mxu0 %v329
    %776 = vmatpush.msra.mxu0 %v325
    %777 = vmatmul.f32.gmra.mxu0 %v691
    %v778 = vpop.f32.mrf.mxu0
    %v779 = vadd.f32 0.0, %v778
    %780 = vdwg.mxu0
    %v781 = vadd.f32 %v697, %v719
    %v782 = vadd.f32 %v698, %v739
    %v783 = vadd.f32 %v699, %v759
    %v784 = vadd.f32 %v700, %v779
    %v785 = vxor.u32 %v781, 2147483648
    %v786 = vmul.f32 %v785, 1.442695
    %v787 = vpow.pop %v786
    %v788 = vadd.f32 %v787, 1.0
    %v789 = vrcp.pop %v788
    %v790 = vmul.f32 %v788, %v789
    %v791 = vsub.f32 1.0, %v790
    %v792 = vmul.f32 %v789, %v791
    %v793 = vadd.f32 %v789, %v792
    %vm794 = vweird.f32 %v788
    %vm795 = vweird.f32 %v789
    %vm796 = vmor %vm794, %vm795
    %v797 = vsel %vm796, %v789, %v793
    %v798 = vand.u32 2147483647, %v788
    %vm799 = vcmp.eq.f32.partialorder %v798, 8.507059e+37
    %v800 = vand.u32 %v788, 2147483648
    %v801 = vor.u32 1.1754944e-38, %v800
    %v802 = vsel %vm799, %v801, %v797
    %v803 = vmul.f32 1.0, %v802
    %v804 = vxor.u32 %v782, 2147483648
    %v805 = vmul.f32 %v804, 1.442695
    %v806 = vpow.pop %v805
    %v807 = vadd.f32 %v806, 1.0
    %v808 = vrcp.pop %v807
    %v809 = vmul.f32 %v807, %v808
    %v810 = vsub.f32 1.0, %v809
    %v811 = vmul.f32 %v808, %v810
    %v812 = vadd.f32 %v808, %v811
    %vm813 = vweird.f32 %v807
    %vm814 = vweird.f32 %v808
    %vm815 = vmor %vm813, %vm814
    %v816 = vsel %vm815, %v808, %v812
    %v817 = vand.u32 2147483647, %v807
    %vm818 = vcmp.eq.f32.partialorder %v817, 8.507059e+37
    %v819 = vand.u32 %v807, 2147483648
    %v820 = vor.u32 1.1754944e-38, %v819
    %v821 = vsel %vm818, %v820, %v816
    %v822 = vmul.f32 1.0, %v821
    %v823 = vtanh.pop %v783
    %v824 = vxor.u32 %v784, 2147483648
    %v825 = vmul.f32 %v824, 1.442695
    %v826 = vpow.pop %v825
    %v827 = vadd.f32 %v826, 1.0
    %v828 = vrcp.pop %v827
    %v829 = vmul.f32 %v827, %v828
    %v830 = vsub.f32 1.0, %v829
    %v831 = vmul.f32 %v828, %v830
    %v832 = vadd.f32 %v828, %v831
    %vm833 = vweird.f32 %v827
    %vm834 = vweird.f32 %v828
    %vm835 = vmor %vm833, %vm834
    %v836 = vsel %vm835, %v828, %v832
    %v837 = vand.u32 2147483647, %v827
    %vm838 = vcmp.eq.f32.partialorder %v837, 8.507059e+37
    %v839 = vand.u32 %v827, 2147483648
    %v840 = vor.u32 1.1754944e-38, %v839
    %v841 = vsel %vm838, %v840, %v836
    %v842 = vmul.f32 1.0, %v841
    %v843 = vmul.f32 %v822, %v689
    %v844 = vmul.f32 %v803, %v823
    %v845 = vadd.f32 %v843, %v844
    %v846 = vtanh.pop %v845
    %v847 = vmul.f32 %v842, %v846
    %s848 = scalar_lea.vmem [#allocation3], 16
    %849 = vst [vmem:[%s848] sm:$0xff] %v847
    %s850 = scalar_lea.vmem [#allocation4], 40
    %851 = vst [vmem:[%s850] sm:$0xff] %v847
    %s852 = scalar_lea.vmem [#allocation2], 96
    %v853 = vld [vmem:[%s852] sm:$0xff]
    %v854 = vld [vmem:[%s852 + $0x8] sm:$0xff]
    %v855 = vld [vmem:[%s852 + $0x10] sm:$0xff]
    %v856 = vld [vmem:[%s852 + $0x18] sm:$0xff]
    %857 = vmatpush.msra.mxu0 %v382
    %858 = vmatpush.msra.mxu0 %v378
    %859 = vmatpush.msra.mxu0 %v374
    %860 = vmatpush.msra.mxu0 %v370
    %861 = vmatpush.msra.mxu0 %v366
    %862 = vmatpush.msra.mxu0 %v362
    %863 = vmatpush.msra.mxu0 %v358
    %864 = vmatpush.msra.mxu0 %v354
    %865 = vmatpush.msra.mxu0 %v350
    %866 = vmatpush.msra.mxu0 %v346
    %867 = vmatpush.msra.mxu0 %v342
    %868 = vmatpush.msra.mxu0 %v338
    %869 = vmatpush.msra.mxu0 %v334
    %870 = vmatpush.msra.mxu0 %v330
    %871 = vmatpush.msra.mxu0 %v326
    %872 = vmatpush.msra.mxu0 %v322
    %873 = vmatmul.f32.gmra.mxu0 %v847
    %v874 = vpop.f32.mrf.mxu0
    %v875 = vadd.f32 0.0, %v874
    %876 = vdwg.mxu0
    %877 = vmatpush.msra.mxu0 %v383
    %878 = vmatpush.msra.mxu0 %v379
    %879 = vmatpush.msra.mxu0 %v375
    %880 = vmatpush.msra.mxu0 %v371
    %881 = vmatpush.msra.mxu0 %v367
    %882 = vmatpush.msra.mxu0 %v363
    %883 = vmatpush.msra.mxu0 %v359
    %884 = vmatpush.msra.mxu0 %v355
    %885 = vmatpush.msra.mxu0 %v351
    %886 = vmatpush.msra.mxu0 %v347
    %887 = vmatpush.msra.mxu0 %v343
    %888 = vmatpush.msra.mxu0 %v339
    %889 = vmatpush.msra.mxu0 %v335
    %890 = vmatpush.msra.mxu0 %v331
    %891 = vmatpush.msra.mxu0 %v327
    %892 = vmatpush.msra.mxu0 %v323
    %893 = vmatmul.f32.gmra.mxu0 %v847
    %v894 = vpop.f32.mrf.mxu0
    %v895 = vadd.f32 0.0, %v894
    %896 = vdwg.mxu0
    %897 = vmatpush.msra.mxu0 %v384
    %898 = vmatpush.msra.mxu0 %v380
    %899 = vmatpush.msra.mxu0 %v376
    %900 = vmatpush.msra.mxu0 %v372
    %901 = vmatpush.msra.mxu0 %v368
    %902 = vmatpush.msra.mxu0 %v364
    %903 = vmatpush.msra.mxu0 %v360
    %904 = vmatpush.msra.mxu0 %v356
    %905 = vmatpush.msra.mxu0 %v352
    %906 = vmatpush.msra.mxu0 %v348
    %907 = vmatpush.msra.mxu0 %v344
    %908 = vmatpush.msra.mxu0 %v340
    %909 = vmatpush.msra.mxu0 %v336
    %910 = vmatpush.msra.mxu0 %v332
    %911 = vmatpush.msra.mxu0 %v328
    %912 = vmatpush.msra.mxu0 %v324
    %913 = vmatmul.f32.gmra.mxu0 %v847
    %v914 = vpop.f32.mrf.mxu0
    %v915 = vadd.f32 0.0, %v914
    %916 = vdwg.mxu0
    %917 = vmatpush.msra.mxu0 %v385
    %918 = vmatpush.msra.mxu0 %v381
    %919 = vmatpush.msra.mxu0 %v377
    %920 = vmatpush.msra.mxu0 %v373
    %921 = vmatpush.msra.mxu0 %v369
    %922 = vmatpush.msra.mxu0 %v365
    %923 = vmatpush.msra.mxu0 %v361
    %924 = vmatpush.msra.mxu0 %v357
    %925 = vmatpush.msra.mxu0 %v353
    %926 = vmatpush.msra.mxu0 %v349
    %927 = vmatpush.msra.mxu0 %v345
    %928 = vmatpush.msra.mxu0 %v341
    %929 = vmatpush.msra.mxu0 %v337
    %930 = vmatpush.msra.mxu0 %v333
    %931 = vmatpush.msra.mxu0 %v329
    %932 = vmatpush.msra.mxu0 %v325
    %933 = vmatmul.f32.gmra.mxu0 %v847
    %v934 = vpop.f32.mrf.mxu0
    %v935 = vadd.f32 0.0, %v934
    %936 = vdwg.mxu0
    %v937 = vadd.f32 %v853, %v875
    %v938 = vadd.f32 %v854, %v895
    %v939 = vadd.f32 %v855, %v915
    %v940 = vadd.f32 %v856, %v935
    %v941 = vxor.u32 %v937, 2147483648
    %v942 = vmul.f32 %v941, 1.442695
    %v943 = vpow.pop %v942
    %v944 = vadd.f32 %v943, 1.0
    %v945 = vrcp.pop %v944
    %v946 = vmul.f32 %v944, %v945
    %v947 = vsub.f32 1.0, %v946
    %v948 = vmul.f32 %v945, %v947
    %v949 = vadd.f32 %v945, %v948
    %vm950 = vweird.f32 %v944
    %vm951 = vweird.f32 %v945
    %vm952 = vmor %vm950, %vm951
    %v953 = vsel %vm952, %v945, %v949
    %v954 = vand.u32 2147483647, %v944
    %vm955 = vcmp.eq.f32.partialorder %v954, 8.507059e+37
    %v956 = vand.u32 %v944, 2147483648
    %v957 = vor.u32 1.1754944e-38, %v956
    %v958 = vsel %vm955, %v957, %v953
    %v959 = vmul.f32 1.0, %v958
    %v960 = vxor.u32 %v938, 2147483648
    %v961 = vmul.f32 %v960, 1.442695
    %v962 = vpow.pop %v961
    %v963 = vadd.f32 %v962, 1.0
    %v964 = vrcp.pop %v963
    %v965 = vmul.f32 %v963, %v964
    %v966 = vsub.f32 1.0, %v965
    %v967 = vmul.f32 %v964, %v966
    %v968 = vadd.f32 %v964, %v967
    %vm969 = vweird.f32 %v963
    %vm970 = vweird.f32 %v964
    %vm971 = vmor %vm969, %vm970
    %v972 = vsel %vm971, %v964, %v968
    %v973 = vand.u32 2147483647, %v963
    %vm974 = vcmp.eq.f32.partialorder %v973, 8.507059e+37
    %v975 = vand.u32 %v963, 2147483648
    %v976 = vor.u32 1.1754944e-38, %v975
    %v977 = vsel %vm974, %v976, %v972
    %v978 = vmul.f32 1.0, %v977
    %v979 = vtanh.pop %v939
    %v980 = vxor.u32 %v940, 2147483648
    %v981 = vmul.f32 %v980, 1.442695
    %v982 = vpow.pop %v981
    %v983 = vadd.f32 %v982, 1.0
    %v984 = vrcp.pop %v983
    %v985 = vmul.f32 %v983, %v984
    %v986 = vsub.f32 1.0, %v985
    %v987 = vmul.f32 %v984, %v986
    %v988 = vadd.f32 %v984, %v987
    %vm989 = vweird.f32 %v983
    %vm990 = vweird.f32 %v984
    %vm991 = vmor %vm989, %vm990
    %v992 = vsel %vm991, %v984, %v988
    %v993 = vand.u32 2147483647, %v983
    %vm994 = vcmp.eq.f32.partialorder %v993, 8.507059e+37
    %v995 = vand.u32 %v983, 2147483648
    %v996 = vor.u32 1.1754944e-38, %v995
    %v997 = vsel %vm994, %v996, %v992
    %v998 = vmul.f32 1.0, %v997
    %v999 = vmul.f32 %v978, %v845
    %v1000 = vmul.f32 %v959, %v979
    %v1001 = vadd.f32 %v999, %v1000
    %v1002 = vtanh.pop %v1001
    %v1003 = vmul.f32 %v998, %v1002
    %s1004 = scalar_lea.vmem [#allocation3], 24
    %1005 = vst [vmem:[%s1004] sm:$0xff] %v1003
    %s1006 = scalar_lea.vmem [#allocation4], 32
    %1007 = vst [vmem:[%s1006] sm:$0xff] %v1003
    %s1008 = scalar_lea.vmem [#allocation2], 128
    %v1009 = vld [vmem:[%s1008] sm:$0xff]
    %v1010 = vld [vmem:[%s1008 + $0x8] sm:$0xff]
    %v1011 = vld [vmem:[%s1008 + $0x10] sm:$0xff]
    %v1012 = vld [vmem:[%s1008 + $0x18] sm:$0xff]
    %1013 = vmatpush.msra.mxu0 %v382
    %1014 = vmatpush.msra.mxu0 %v378
    %1015 = vmatpush.msra.mxu0 %v374
    %1016 = vmatpush.msra.mxu0 %v370
    %1017 = vmatpush.msra.mxu0 %v366
    %1018 = vmatpush.msra.mxu0 %v362
    %1019 = vmatpush.msra.mxu0 %v358
    %1020 = vmatpush.msra.mxu0 %v354
    %1021 = vmatpush.msra.mxu0 %v350
    %1022 = vmatpush.msra.mxu0 %v346
    %1023 = vmatpush.msra.mxu0 %v342
    %1024 = vmatpush.msra.mxu0 %v338
    %1025 = vmatpush.msra.mxu0 %v334
    %1026 = vmatpush.msra.mxu0 %v330
    %1027 = vmatpush.msra.mxu0 %v326
    %1028 = vmatpush.msra.mxu0 %v322
    %1029 = vmatmul.f32.gmra.mxu0 %v1003
    %v1030 = vpop.f32.mrf.mxu0
    %v1031 = vadd.f32 0.0, %v1030
    %1032 = vdwg.mxu0
    %1033 = vmatpush.msra.mxu0 %v383
    %1034 = vmatpush.msra.mxu0 %v379
    %1035 = vmatpush.msra.mxu0 %v375
    %1036 = vmatpush.msra.mxu0 %v371
    %1037 = vmatpush.msra.mxu0 %v367
    %1038 = vmatpush.msra.mxu0 %v363
    %1039 = vmatpush.msra.mxu0 %v359
    %1040 = vmatpush.msra.mxu0 %v355
    %1041 = vmatpush.msra.mxu0 %v351
    %1042 = vmatpush.msra.mxu0 %v347
    %1043 = vmatpush.msra.mxu0 %v343
    %1044 = vmatpush.msra.mxu0 %v339
    %1045 = vmatpush.msra.mxu0 %v335
    %1046 = vmatpush.msra.mxu0 %v331
    %1047 = vmatpush.msra.mxu0 %v327
    %1048 = vmatpush.msra.mxu0 %v323
    %1049 = vmatmul.f32.gmra.mxu0 %v1003
    %v1050 = vpop.f32.mrf.mxu0
    %v1051 = vadd.f32 0.0, %v1050
    %1052 = vdwg.mxu0
    %1053 = vmatpush.msra.mxu0 %v384
    %1054 = vmatpush.msra.mxu0 %v380
    %1055 = vmatpush.msra.mxu0 %v376
    %1056 = vmatpush.msra.mxu0 %v372
    %1057 = vmatpush.msra.mxu0 %v368
    %1058 = vmatpush.msra.mxu0 %v364
    %1059 = vmatpush.msra.mxu0 %v360
    %1060 = vmatpush.msra.mxu0 %v356
    %1061 = vmatpush.msra.mxu0 %v352
    %1062 = vmatpush.msra.mxu0 %v348
    %1063 = vmatpush.msra.mxu0 %v344
    %1064 = vmatpush.msra.mxu0 %v340
    %1065 = vmatpush.msra.mxu0 %v336
    %1066 = vmatpush.msra.mxu0 %v332
    %1067 = vmatpush.msra.mxu0 %v328
    %1068 = vmatpush.msra.mxu0 %v324
    %1069 = vmatmul.f32.gmra.mxu0 %v1003
    %v1070 = vpop.f32.mrf.mxu0
    %v1071 = vadd.f32 0.0, %v1070
    %1072 = vdwg.mxu0
    %1073 = vmatpush.msra.mxu0 %v385
    %1074 = vmatpush.msra.mxu0 %v381
    %1075 = vmatpush.msra.mxu0 %v377
    %1076 = vmatpush.msra.mxu0 %v373
    %1077 = vmatpush.msra.mxu0 %v369
    %1078 = vmatpush.msra.mxu0 %v365
    %1079 = vmatpush.msra.mxu0 %v361
    %1080 = vmatpush.msra.mxu0 %v357
    %1081 = vmatpush.msra.mxu0 %v353
    %1082 = vmatpush.msra.mxu0 %v349
    %1083 = vmatpush.msra.mxu0 %v345
    %1084 = vmatpush.msra.mxu0 %v341
    %1085 = vmatpush.msra.mxu0 %v337
    %1086 = vmatpush.msra.mxu0 %v333
    %1087 = vmatpush.msra.mxu0 %v329
    %1088 = vmatpush.msra.mxu0 %v325
    %1089 = vmatmul.f32.gmra.mxu0 %v1003
    %v1090 = vpop.f32.mrf.mxu0
    %v1091 = vadd.f32 0.0, %v1090
    %1092 = vdwg.mxu0
    %v1093 = vadd.f32 %v1009, %v1031
    %v1094 = vadd.f32 %v1010, %v1051
    %v1095 = vadd.f32 %v1011, %v1071
    %v1096 = vadd.f32 %v1012, %v1091
    %v1097 = vxor.u32 %v1093, 2147483648
    %v1098 = vmul.f32 %v1097, 1.442695
    %v1099 = vpow.pop %v1098
    %v1100 = vadd.f32 %v1099, 1.0
    %v1101 = vrcp.pop %v1100
    %v1102 = vmul.f32 %v1100, %v1101
    %v1103 = vsub.f32 1.0, %v1102
    %v1104 = vmul.f32 %v1101, %v1103
    %v1105 = vadd.f32 %v1101, %v1104
    %vm1106 = vweird.f32 %v1100
    %vm1107 = vweird.f32 %v1101
    %vm1108 = vmor %vm1106, %vm1107
    %v1109 = vsel %vm1108, %v1101, %v1105
    %v1110 = vand.u32 2147483647, %v1100
    %vm1111 = vcmp.eq.f32.partialorder %v1110, 8.507059e+37
    %v1112 = vand.u32 %v1100, 2147483648
    %v1113 = vor.u32 1.1754944e-38, %v1112
    %v1114 = vsel %vm1111, %v1113, %v1109
    %v1115 = vmul.f32 1.0, %v1114
    %v1116 = vxor.u32 %v1094, 2147483648
    %v1117 = vmul.f32 %v1116, 1.442695
    %v1118 = vpow.pop %v1117
    %v1119 = vadd.f32 %v1118, 1.0
    %v1120 = vrcp.pop %v1119
    %v1121 = vmul.f32 %v1119, %v1120
    %v1122 = vsub.f32 1.0, %v1121
    %v1123 = vmul.f32 %v1120, %v1122
    %v1124 = vadd.f32 %v1120, %v1123
    %vm1125 = vweird.f32 %v1119
    %vm1126 = vweird.f32 %v1120
    %vm1127 = vmor %vm1125, %vm1126
    %v1128 = vsel %vm1127, %v1120, %v1124
    %v1129 = vand.u32 2147483647, %v1119
    %vm1130 = vcmp.eq.f32.partialorder %v1129, 8.507059e+37
    %v1131 = vand.u32 %v1119, 2147483648
    %v1132 = vor.u32 1.1754944e-38, %v1131
    %v1133 = vsel %vm1130, %v1132, %v1128
    %v1134 = vmul.f32 1.0, %v1133
    %v1135 = vtanh.pop %v1095
    %v1136 = vxor.u32 %v1096, 2147483648
    %v1137 = vmul.f32 %v1136, 1.442695
    %v1138 = vpow.pop %v1137
    %v1139 = vadd.f32 %v1138, 1.0
    %v1140 = vrcp.pop %v1139
    %v1141 = vmul.f32 %v1139, %v1140
    %v1142 = vsub.f32 1.0, %v1141
    %v1143 = vmul.f32 %v1140, %v1142
    %v1144 = vadd.f32 %v1140, %v1143
    %vm1145 = vweird.f32 %v1139
    %vm1146 = vweird.f32 %v1140
    %vm1147 = vmor %vm1145, %vm1146
    %v1148 = vsel %vm1147, %v1140, %v1144
    %v1149 = vand.u32 2147483647, %v1139
    %vm1150 = vcmp.eq.f32.partialorder %v1149, 8.507059e+37
    %v1151 = vand.u32 %v1139, 2147483648
    %v1152 = vor.u32 1.1754944e-38, %v1151
    %v1153 = vsel %vm1150, %v1152, %v1148
    %v1154 = vmul.f32 1.0, %v1153
    %v1155 = vmul.f32 %v1134, %v1001
    %v1156 = vmul.f32 %v1115, %v1135
    %v1157 = vadd.f32 %v1155, %v1156
    %v1158 = vtanh.pop %v1157
    %v1159 = vmul.f32 %v1154, %v1158
    %s1160 = scalar_lea.vmem [#allocation3], 32
    %1161 = vst [vmem:[%s1160] sm:$0xff] %v1159
    %s1162 = scalar_lea.vmem [#allocation4], 24
    %1163 = vst [vmem:[%s1162] sm:$0xff] %v1159
    %s1164 = scalar_lea.vmem [#allocation2], 160
    %v1165 = vld [vmem:[%s1164] sm:$0xff]
    %v1166 = vld [vmem:[%s1164 + $0x8] sm:$0xff]
    %v1167 = vld [vmem:[%s1164 + $0x10] sm:$0xff]
    %v1168 = vld [vmem:[%s1164 + $0x18] sm:$0xff]
    %1169 = vmatpush.msra.mxu0 %v382
    %1170 = vmatpush.msra.mxu0 %v378
    %1171 = vmatpush.msra.mxu0 %v374
    %1172 = vmatpush.msra.mxu0 %v370
    %1173 = vmatpush.msra.mxu0 %v366
    %1174 = vmatpush.msra.mxu0 %v362
    %1175 = vmatpush.msra.mxu0 %v358
    %1176 = vmatpush.msra.mxu0 %v354
    %1177 = vmatpush.msra.mxu0 %v350
    %1178 = vmatpush.msra.mxu0 %v346
    %1179 = vmatpush.msra.mxu0 %v342
    %1180 = vmatpush.msra.mxu0 %v338
    %1181 = vmatpush.msra.mxu0 %v334
    %1182 = vmatpush.msra.mxu0 %v330
    %1183 = vmatpush.msra.mxu0 %v326
    %1184 = vmatpush.msra.mxu0 %v322
    %1185 = vmatmul.f32.gmra.mxu0 %v1159
    %v1186 = vpop.f32.mrf.mxu0
    %v1187 = vadd.f32 0.0, %v1186
    %1188 = vdwg.mxu0
    %1189 = vmatpush.msra.mxu0 %v383
    %1190 = vmatpush.msra.mxu0 %v379
    %1191 = vmatpush.msra.mxu0 %v375
    %1192 = vmatpush.msra.mxu0 %v371
    %1193 = vmatpush.msra.mxu0 %v367
    %1194 = vmatpush.msra.mxu0 %v363
    %1195 = vmatpush.msra.mxu0 %v359
    %1196 = vmatpush.msra.mxu0 %v355
    %1197 = vmatpush.msra.mxu0 %v351
    %1198 = vmatpush.msra.mxu0 %v347
    %1199 = vmatpush.msra.mxu0 %v343
    %1200 = vmatpush.msra.mxu0 %v339
    %1201 = vmatpush.msra.mxu0 %v335
    %1202 = vmatpush.msra.mxu0 %v331
    %1203 = vmatpush.msra.mxu0 %v327
    %1204 = vmatpush.msra.mxu0 %v323
    %1205 = vmatmul.f32.gmra.mxu0 %v1159
    %v1206 = vpop.f32.mrf.mxu0
    %v1207 = vadd.f32 0.0, %v1206
    %1208 = vdwg.mxu0
    %1209 = vmatpush.msra.mxu0 %v384
    %1210 = vmatpush.msra.mxu0 %v380
    %1211 = vmatpush.msra.mxu0 %v376
    %1212 = vmatpush.msra.mxu0 %v372
    %1213 = vmatpush.msra.mxu0 %v368
    %1214 = vmatpush.msra.mxu0 %v364
    %1215 = vmatpush.msra.mxu0 %v360
    %1216 = vmatpush.msra.mxu0 %v356
    %1217 = vmatpush.msra.mxu0 %v352
    %1218 = vmatpush.msra.mxu0 %v348
    %1219 = vmatpush.msra.mxu0 %v344
    %1220 = vmatpush.msra.mxu0 %v340
    %1221 = vmatpush.msra.mxu0 %v336
    %1222 = vmatpush.msra.mxu0 %v332
    %1223 = vmatpush.msra.mxu0 %v328
    %1224 = vmatpush.msra.mxu0 %v324
    %1225 = vmatmul.f32.gmra.mxu0 %v1159
    %v1226 = vpop.f32.mrf.mxu0
    %v1227 = vadd.f32 0.0, %v1226
    %1228 = vdwg.mxu0
    %1229 = vmatpush.msra.mxu0 %v385
    %1230 = vmatpush.msra.mxu0 %v381
    %1231 = vmatpush.msra.mxu0 %v377
    %1232 = vmatpush.msra.mxu0 %v373
    %1233 = vmatpush.msra.mxu0 %v369
    %1234 = vmatpush.msra.mxu0 %v365
    %1235 = vmatpush.msra.mxu0 %v361
    %1236 = vmatpush.msra.mxu0 %v357
    %1237 = vmatpush.msra.mxu0 %v353
    %1238 = vmatpush.msra.mxu0 %v349
    %1239 = vmatpush.msra.mxu0 %v345
    %1240 = vmatpush.msra.mxu0 %v341
    %1241 = vmatpush.msra.mxu0 %v337
    %1242 = vmatpush.msra.mxu0 %v333
    %1243 = vmatpush.msra.mxu0 %v329
    %1244 = vmatpush.msra.mxu0 %v325
    %1245 = vmatmul.f32.gmra.mxu0 %v1159
    %v1246 = vpop.f32.mrf.mxu0
    %v1247 = vadd.f32 0.0, %v1246
    %1248 = vdwg.mxu0
    %v1249 = vadd.f32 %v1165, %v1187
    %v1250 = vadd.f32 %v1166, %v1207
    %v1251 = vadd.f32 %v1167, %v1227
    %v1252 = vadd.f32 %v1168, %v1247
    %v1253 = vxor.u32 %v1249, 2147483648
    %v1254 = vmul.f32 %v1253, 1.442695
    %v1255 = vpow.pop %v1254
    %v1256 = vadd.f32 %v1255, 1.0
    %v1257 = vrcp.pop %v1256
    %v1258 = vmul.f32 %v1256, %v1257
    %v1259 = vsub.f32 1.0, %v1258
    %v1260 = vmul.f32 %v1257, %v1259
    %v1261 = vadd.f32 %v1257, %v1260
    %vm1262 = vweird.f32 %v1256
    %vm1263 = vweird.f32 %v1257
    %vm1264 = vmor %vm1262, %vm1263
    %v1265 = vsel %vm1264, %v1257, %v1261
    %v1266 = vand.u32 2147483647, %v1256
    %vm1267 = vcmp.eq.f32.partialorder %v1266, 8.507059e+37
    %v1268 = vand.u32 %v1256, 2147483648
    %v1269 = vor.u32 1.1754944e-38, %v1268
    %v1270 = vsel %vm1267, %v1269, %v1265
    %v1271 = vmul.f32 1.0, %v1270
    %v1272 = vxor.u32 %v1250, 2147483648
    %v1273 = vmul.f32 %v1272, 1.442695
    %v1274 = vpow.pop %v1273
    %v1275 = vadd.f32 %v1274, 1.0
    %v1276 = vrcp.pop %v1275
    %v1277 = vmul.f32 %v1275, %v1276
    %v1278 = vsub.f32 1.0, %v1277
    %v1279 = vmul.f32 %v1276, %v1278
    %v1280 = vadd.f32 %v1276, %v1279
    %vm1281 = vweird.f32 %v1275
    %vm1282 = vweird.f32 %v1276
    %vm1283 = vmor %vm1281, %vm1282
    %v1284 = vsel %vm1283, %v1276, %v1280
    %v1285 = vand.u32 2147483647, %v1275
    %vm1286 = vcmp.eq.f32.partialorder %v1285, 8.507059e+37
    %v1287 = vand.u32 %v1275, 2147483648
    %v1288 = vor.u32 1.1754944e-38, %v1287
    %v1289 = vsel %vm1286, %v1288, %v1284
    %v1290 = vmul.f32 1.0, %v1289
    %v1291 = vtanh.pop %v1251
    %v1292 = vxor.u32 %v1252, 2147483648
    %v1293 = vmul.f32 %v1292, 1.442695
    %v1294 = vpow.pop %v1293
    %v1295 = vadd.f32 %v1294, 1.0
    %v1296 = vrcp.pop %v1295
    %v1297 = vmul.f32 %v1295, %v1296
    %v1298 = vsub.f32 1.0, %v1297
    %v1299 = vmul.f32 %v1296, %v1298
    %v1300 = vadd.f32 %v1296, %v1299
    %vm1301 = vweird.f32 %v1295
    %vm1302 = vweird.f32 %v1296
    %vm1303 = vmor %vm1301, %vm1302
    %v1304 = vsel %vm1303, %v1296, %v1300
    %v1305 = vand.u32 2147483647, %v1295
    %vm1306 = vcmp.eq.f32.partialorder %v1305, 8.507059e+37
    %v1307 = vand.u32 %v1295, 2147483648
    %v1308 = vor.u32 1.1754944e-38, %v1307
    %v1309 = vsel %vm1306, %v1308, %v1304
    %v1310 = vmul.f32 1.0, %v1309
    %v1311 = vmul.f32 %v1290, %v1157
    %v1312 = vmul.f32 %v1271, %v1291
    %v1313 = vadd.f32 %v1311, %v1312
    %v1314 = vtanh.pop %v1313
    %v1315 = vmul.f32 %v1310, %v1314
    %s1316 = scalar_lea.vmem [#allocation3], 40
    %1317 = vst [vmem:[%s1316] sm:$0xff] %v1315
    %s1318 = scalar_lea.vmem [#allocation4], 16
    %1319 = vst [vmem:[%s1318] sm:$0xff] %v1315
    %s1320 = scalar_lea.vmem [#allocation2], 192
    %v1321 = vld [vmem:[%s1320] sm:$0xff]
    %v1322 = vld [vmem:[%s1320 + $0x8] sm:$0xff]
    %v1323 = vld [vmem:[%s1320 + $0x10] sm:$0xff]
    %v1324 = vld [vmem:[%s1320 + $0x18] sm:$0xff]
    %1325 = vmatpush.msra.mxu0 %v382
    %1326 = vmatpush.msra.mxu0 %v378
    %1327 = vmatpush.msra.mxu0 %v374
    %1328 = vmatpush.msra.mxu0 %v370
    %1329 = vmatpush.msra.mxu0 %v366
    %1330 = vmatpush.msra.mxu0 %v362
    %1331 = vmatpush.msra.mxu0 %v358
    %1332 = vmatpush.msra.mxu0 %v354
    %1333 = vmatpush.msra.mxu0 %v350
    %1334 = vmatpush.msra.mxu0 %v346
    %1335 = vmatpush.msra.mxu0 %v342
    %1336 = vmatpush.msra.mxu0 %v338
    %1337 = vmatpush.msra.mxu0 %v334
    %1338 = vmatpush.msra.mxu0 %v330
    %1339 = vmatpush.msra.mxu0 %v326
    %1340 = vmatpush.msra.mxu0 %v322
    %1341 = vmatmul.f32.gmra.mxu0 %v1315
    %v1342 = vpop.f32.mrf.mxu0
    %v1343 = vadd.f32 0.0, %v1342
    %1344 = vdwg.mxu0
    %1345 = vmatpush.msra.mxu0 %v383
    %1346 = vmatpush.msra.mxu0 %v379
    %1347 = vmatpush.msra.mxu0 %v375
    %1348 = vmatpush.msra.mxu0 %v371
    %1349 = vmatpush.msra.mxu0 %v367
    %1350 = vmatpush.msra.mxu0 %v363
    %1351 = vmatpush.msra.mxu0 %v359
    %1352 = vmatpush.msra.mxu0 %v355
    %1353 = vmatpush.msra.mxu0 %v351
    %1354 = vmatpush.msra.mxu0 %v347
    %1355 = vmatpush.msra.mxu0 %v343
    %1356 = vmatpush.msra.mxu0 %v339
    %1357 = vmatpush.msra.mxu0 %v335
    %1358 = vmatpush.msra.mxu0 %v331
    %1359 = vmatpush.msra.mxu0 %v327
    %1360 = vmatpush.msra.mxu0 %v323
    %1361 = vmatmul.f32.gmra.mxu0 %v1315
    %v1362 = vpop.f32.mrf.mxu0
    %v1363 = vadd.f32 0.0, %v1362
    %1364 = vdwg.mxu0
    %1365 = vmatpush.msra.mxu0 %v384
    %1366 = vmatpush.msra.mxu0 %v380
    %1367 = vmatpush.msra.mxu0 %v376
    %1368 = vmatpush.msra.mxu0 %v372
    %1369 = vmatpush.msra.mxu0 %v368
    %1370 = vmatpush.msra.mxu0 %v364
    %1371 = vmatpush.msra.mxu0 %v360
    %1372 = vmatpush.msra.mxu0 %v356
    %1373 = vmatpush.msra.mxu0 %v352
    %1374 = vmatpush.msra.mxu0 %v348
    %1375 = vmatpush.msra.mxu0 %v344
    %1376 = vmatpush.msra.mxu0 %v340
    %1377 = vmatpush.msra.mxu0 %v336
    %1378 = vmatpush.msra.mxu0 %v332
    %1379 = vmatpush.msra.mxu0 %v328
    %1380 = vmatpush.msra.mxu0 %v324
    %1381 = vmatmul.f32.gmra.mxu0 %v1315
    %v1382 = vpop.f32.mrf.mxu0
    %v1383 = vadd.f32 0.0, %v1382
    %1384 = vdwg.mxu0
    %1385 = vmatpush.msra.mxu0 %v385
    %1386 = vmatpush.msra.mxu0 %v381
    %1387 = vmatpush.msra.mxu0 %v377
    %1388 = vmatpush.msra.mxu0 %v373
    %1389 = vmatpush.msra.mxu0 %v369
    %1390 = vmatpush.msra.mxu0 %v365
    %1391 = vmatpush.msra.mxu0 %v361
    %1392 = vmatpush.msra.mxu0 %v357
    %1393 = vmatpush.msra.mxu0 %v353
    %1394 = vmatpush.msra.mxu0 %v349
    %1395 = vmatpush.msra.mxu0 %v345
    %1396 = vmatpush.msra.mxu0 %v341
    %1397 = vmatpush.msra.mxu0 %v337
    %1398 = vmatpush.msra.mxu0 %v333
    %1399 = vmatpush.msra.mxu0 %v329
    %1400 = vmatpush.msra.mxu0 %v325
    %1401 = vmatmul.f32.gmra.mxu0 %v1315
    %v1402 = vpop.f32.mrf.mxu0
    %v1403 = vadd.f32 0.0, %v1402
    %1404 = vdwg.mxu0
    %v1405 = vadd.f32 %v1321, %v1343
    %v1406 = vadd.f32 %v1322, %v1363
    %v1407 = vadd.f32 %v1323, %v1383
    %v1408 = vadd.f32 %v1324, %v1403
    %v1409 = vxor.u32 %v1405, 2147483648
    %v1410 = vmul.f32 %v1409, 1.442695
    %v1411 = vpow.pop %v1410
    %v1412 = vadd.f32 %v1411, 1.0
    %v1413 = vrcp.pop %v1412
    %v1414 = vmul.f32 %v1412, %v1413
    %v1415 = vsub.f32 1.0, %v1414
    %v1416 = vmul.f32 %v1413, %v1415
    %v1417 = vadd.f32 %v1413, %v1416
    %vm1418 = vweird.f32 %v1412
    %vm1419 = vweird.f32 %v1413
    %vm1420 = vmor %vm1418, %vm1419
    %v1421 = vsel %vm1420, %v1413, %v1417
    %v1422 = vand.u32 2147483647, %v1412
    %vm1423 = vcmp.eq.f32.partialorder %v1422, 8.507059e+37
    %v1424 = vand.u32 %v1412, 2147483648
    %v1425 = vor.u32 1.1754944e-38, %v1424
    %v1426 = vsel %vm1423, %v1425, %v1421
    %v1427 = vmul.f32 1.0, %v1426
    %v1428 = vxor.u32 %v1406, 2147483648
    %v1429 = vmul.f32 %v1428, 1.442695
    %v1430 = vpow.pop %v1429
    %v1431 = vadd.f32 %v1430, 1.0
    %v1432 = vrcp.pop %v1431
    %v1433 = vmul.f32 %v1431, %v1432
    %v1434 = vsub.f32 1.0, %v1433
    %v1435 = vmul.f32 %v1432, %v1434
    %v1436 = vadd.f32 %v1432, %v1435
    %vm1437 = vweird.f32 %v1431
    %vm1438 = vweird.f32 %v1432
    %vm1439 = vmor %vm1437, %vm1438
    %v1440 = vsel %vm1439, %v1432, %v1436
    %v1441 = vand.u32 2147483647, %v1431
    %vm1442 = vcmp.eq.f32.partialorder %v1441, 8.507059e+37
    %v1443 = vand.u32 %v1431, 2147483648
    %v1444 = vor.u32 1.1754944e-38, %v1443
    %v1445 = vsel %vm1442, %v1444, %v1440
    %v1446 = vmul.f32 1.0, %v1445
    %v1447 = vtanh.pop %v1407
    %v1448 = vxor.u32 %v1408, 2147483648
    %v1449 = vmul.f32 %v1448, 1.442695
    %v1450 = vpow.pop %v1449
    %v1451 = vadd.f32 %v1450, 1.0
    %v1452 = vrcp.pop %v1451
    %v1453 = vmul.f32 %v1451, %v1452
    %v1454 = vsub.f32 1.0, %v1453
    %v1455 = vmul.f32 %v1452, %v1454
    %v1456 = vadd.f32 %v1452, %v1455
    %vm1457 = vweird.f32 %v1451
    %vm1458 = vweird.f32 %v1452
    %vm1459 = vmor %vm1457, %vm1458
    %v1460 = vsel %vm1459, %v1452, %v1456
    %v1461 = vand.u32 2147483647, %v1451
    %vm1462 = vcmp.eq.f32.partialorder %v1461, 8.507059e+37
    %v1463 = vand.u32 %v1451, 2147483648
    %v1464 = vor.u32 1.1754944e-38, %v1463
    %v1465 = vsel %vm1462, %v1464, %v1460
    %v1466 = vmul.f32 1.0, %v1465
    %v1467 = vmul.f32 %v1446, %v1313
    %v1468 = vmul.f32 %v1427, %v1447
    %v1469 = vadd.f32 %v1467, %v1468
    %v1470 = vtanh.pop %v1469
    %v1471 = vmul.f32 %v1466, %v1470
    %s1472 = scalar_lea.vmem [#allocation3], 48
    %1473 = vst [vmem:[%s1472] sm:$0xff] %v1471
    %s1474 = scalar_lea.vmem [#allocation4], 8
    %1475 = vst [vmem:[%s1474] sm:$0xff] %v1471
    %s1476 = scalar_lea.vmem [#allocation2], 224
    %v1477 = vld [vmem:[%s1476] sm:$0xff]
    %v1478 = vld [vmem:[%s1476 + $0x8] sm:$0xff]
    %v1479 = vld [vmem:[%s1476 + $0x10] sm:$0xff]
    %v1480 = vld [vmem:[%s1476 + $0x18] sm:$0xff]
    %1481 = vmatpush.msra.mxu0 %v382
    %1482 = vmatpush.msra.mxu0 %v378
    %1483 = vmatpush.msra.mxu0 %v374
    %1484 = vmatpush.msra.mxu0 %v370
    %1485 = vmatpush.msra.mxu0 %v366
    %1486 = vmatpush.msra.mxu0 %v362
    %1487 = vmatpush.msra.mxu0 %v358
    %1488 = vmatpush.msra.mxu0 %v354
    %1489 = vmatpush.msra.mxu0 %v350
    %1490 = vmatpush.msra.mxu0 %v346
    %1491 = vmatpush.msra.mxu0 %v342
    %1492 = vmatpush.msra.mxu0 %v338
    %1493 = vmatpush.msra.mxu0 %v334
    %1494 = vmatpush.msra.mxu0 %v330
    %1495 = vmatpush.msra.mxu0 %v326
    %1496 = vmatpush.msra.mxu0 %v322
    %1497 = vmatmul.f32.gmra.mxu0 %v1471
    %v1498 = vpop.f32.mrf.mxu0
    %v1499 = vadd.f32 0.0, %v1498
    %1500 = vdwg.mxu0
    %1501 = vmatpush.msra.mxu0 %v383
    %1502 = vmatpush.msra.mxu0 %v379
    %1503 = vmatpush.msra.mxu0 %v375
    %1504 = vmatpush.msra.mxu0 %v371
    %1505 = vmatpush.msra.mxu0 %v367
    %1506 = vmatpush.msra.mxu0 %v363
    %1507 = vmatpush.msra.mxu0 %v359
    %1508 = vmatpush.msra.mxu0 %v355
    %1509 = vmatpush.msra.mxu0 %v351
    %1510 = vmatpush.msra.mxu0 %v347
    %1511 = vmatpush.msra.mxu0 %v343
    %1512 = vmatpush.msra.mxu0 %v339
    %1513 = vmatpush.msra.mxu0 %v335
    %1514 = vmatpush.msra.mxu0 %v331
    %1515 = vmatpush.msra.mxu0 %v327
    %1516 = vmatpush.msra.mxu0 %v323
    %1517 = vmatmul.f32.gmra.mxu0 %v1471
    %v1518 = vpop.f32.mrf.mxu0
    %v1519 = vadd.f32 0.0, %v1518
    %1520 = vdwg.mxu0
    %1521 = vmatpush.msra.mxu0 %v384
    %1522 = vmatpush.msra.mxu0 %v380
    %1523 = vmatpush.msra.mxu0 %v376
    %1524 = vmatpush.msra.mxu0 %v372
    %1525 = vmatpush.msra.mxu0 %v368
    %1526 = vmatpush.msra.mxu0 %v364
    %1527 = vmatpush.msra.mxu0 %v360
    %1528 = vmatpush.msra.mxu0 %v356
    %1529 = vmatpush.msra.mxu0 %v352
    %1530 = vmatpush.msra.mxu0 %v348
    %1531 = vmatpush.msra.mxu0 %v344
    %1532 = vmatpush.msra.mxu0 %v340
    %1533 = vmatpush.msra.mxu0 %v336
    %1534 = vmatpush.msra.mxu0 %v332
    %1535 = vmatpush.msra.mxu0 %v328
    %1536 = vmatpush.msra.mxu0 %v324
    %1537 = vmatmul.f32.gmra.mxu0 %v1471
    %v1538 = vpop.f32.mrf.mxu0
    %v1539 = vadd.f32 0.0, %v1538
    %1540 = vdwg.mxu0
    %1541 = vmatpush.msra.mxu0 %v385
    %1542 = vmatpush.msra.mxu0 %v381
    %1543 = vmatpush.msra.mxu0 %v377
    %1544 = vmatpush.msra.mxu0 %v373
    %1545 = vmatpush.msra.mxu0 %v369
    %1546 = vmatpush.msra.mxu0 %v365
    %1547 = vmatpush.msra.mxu0 %v361
    %1548 = vmatpush.msra.mxu0 %v357
    %1549 = vmatpush.msra.mxu0 %v353
    %1550 = vmatpush.msra.mxu0 %v349
    %1551 = vmatpush.msra.mxu0 %v345
    %1552 = vmatpush.msra.mxu0 %v341
    %1553 = vmatpush.msra.mxu0 %v337
    %1554 = vmatpush.msra.mxu0 %v333
    %1555 = vmatpush.msra.mxu0 %v329
    %1556 = vmatpush.msra.mxu0 %v325
    %1557 = vmatmul.f32.gmra.mxu0 %v1471
    %v1558 = vpop.f32.mrf.mxu0
    %v1559 = vadd.f32 0.0, %v1558
    %1560 = vdwg.mxu0
    %v1561 = vadd.f32 %v1477, %v1499
    %v1562 = vadd.f32 %v1478, %v1519
    %v1563 = vadd.f32 %v1479, %v1539
    %v1564 = vadd.f32 %v1480, %v1559
    %v1565 = vxor.u32 %v1561, 2147483648
    %v1566 = vmul.f32 %v1565, 1.442695
    %v1567 = vpow.pop %v1566
    %v1568 = vadd.f32 %v1567, 1.0
    %v1569 = vrcp.pop %v1568
    %v1570 = vmul.f32 %v1568, %v1569
    %v1571 = vsub.f32 1.0, %v1570
    %v1572 = vmul.f32 %v1569, %v1571
    %v1573 = vadd.f32 %v1569, %v1572
    %vm1574 = vweird.f32 %v1568
    %vm1575 = vweird.f32 %v1569
    %vm1576 = vmor %vm1574, %vm1575
    %v1577 = vsel %vm1576, %v1569, %v1573
    %v1578 = vand.u32 2147483647, %v1568
    %vm1579 = vcmp.eq.f32.partialorder %v1578, 8.507059e+37
    %v1580 = vand.u32 %v1568, 2147483648
    %v1581 = vor.u32 1.1754944e-38, %v1580
    %v1582 = vsel %vm1579, %v1581, %v1577
    %v1583 = vmul.f32 1.0, %v1582
    %v1584 = vxor.u32 %v1562, 2147483648
    %v1585 = vmul.f32 %v1584, 1.442695
    %v1586 = vpow.pop %v1585
    %v1587 = vadd.f32 %v1586, 1.0
    %v1588 = vrcp.pop %v1587
    %v1589 = vmul.f32 %v1587, %v1588
    %v1590 = vsub.f32 1.0, %v1589
    %v1591 = vmul.f32 %v1588, %v1590
    %v1592 = vadd.f32 %v1588, %v1591
    %vm1593 = vweird.f32 %v1587
    %vm1594 = vweird.f32 %v1588
    %vm1595 = vmor %vm1593, %vm1594
    %v1596 = vsel %vm1595, %v1588, %v1592
    %v1597 = vand.u32 2147483647, %v1587
    %vm1598 = vcmp.eq.f32.partialorder %v1597, 8.507059e+37
    %v1599 = vand.u32 %v1587, 2147483648
    %v1600 = vor.u32 1.1754944e-38, %v1599
    %v1601 = vsel %vm1598, %v1600, %v1596
    %v1602 = vmul.f32 1.0, %v1601
    %v1603 = vtanh.pop %v1563
    %v1604 = vxor.u32 %v1564, 2147483648
    %v1605 = vmul.f32 %v1604, 1.442695
    %v1606 = vpow.pop %v1605
    %v1607 = vadd.f32 %v1606, 1.0
    %v1608 = vrcp.pop %v1607
    %v1609 = vmul.f32 %v1607, %v1608
    %v1610 = vsub.f32 1.0, %v1609
    %v1611 = vmul.f32 %v1608, %v1610
    %v1612 = vadd.f32 %v1608, %v1611
    %vm1613 = vweird.f32 %v1607
    %vm1614 = vweird.f32 %v1608
    %vm1615 = vmor %vm1613, %vm1614
    %v1616 = vsel %vm1615, %v1608, %v1612
    %v1617 = vand.u32 2147483647, %v1607
    %vm1618 = vcmp.eq.f32.partialorder %v1617, 8.507059e+37
    %v1619 = vand.u32 %v1607, 2147483648
    %v1620 = vor.u32 1.1754944e-38, %v1619
    %v1621 = vsel %vm1618, %v1620, %v1616
    %v1622 = vmul.f32 1.0, %v1621
    %v1623 = vmul.f32 %v1602, %v1469
    %v1624 = vmul.f32 %v1583, %v1603
    %v1625 = vadd.f32 %v1623, %v1624
    %v1626 = vtanh.pop %v1625
    %v1627 = vmul.f32 %v1622, %v1626
    %s1628 = scalar_lea.vmem [#allocation3], 56
    %1629 = vst [vmem:[%s1628] sm:$0xff] %v1627
    %1630 = vst [vmem:[#allocation4] sm:$0xff] %v1627
    %v1631 = vld [vmem:[#allocation3] sm:$0xff]
    %v1632 = vld [vmem:[#allocation3 + $0x8] sm:$0xff]
    %v1633 = vld [vmem:[#allocation3 + $0x10] sm:$0xff]
    %v1634 = vld [vmem:[#allocation3 + $0x18] sm:$0xff]
    %v1635 = vld [vmem:[#allocation3 + $0x20] sm:$0xff]
    %v1636 = vld [vmem:[#allocation3 + $0x28] sm:$0xff]
    %v1637 = vld [vmem:[#allocation3 + $0x30] sm:$0xff]
    %v1638 = vld [vmem:[#allocation3 + $0x38] sm:$0xff]
    %v1639 = vld [vmem:[%s4] sm:$0xff]
    %v1640 = vld [vmem:[%s4 + $0x8] sm:$0xff]
    %v1641 = vld [vmem:[%s4 + $0x10] sm:$0xff]
    %v1642 = vld [vmem:[%s4 + $0x18] sm:$0xff]
    %v1643 = vld [vmem:[%s4 + $0x20] sm:$0xff]
    %v1644 = vld [vmem:[%s4 + $0x28] sm:$0xff]
    %v1645 = vld [vmem:[%s4 + $0x30] sm:$0xff]
    %v1646 = vld [vmem:[%s4 + $0x38] sm:$0xff]
    %v1647 = vld [vmem:[%s4 + $0x40] sm:$0xff]
    %v1648 = vld [vmem:[%s4 + $0x48] sm:$0xff]
    %v1649 = vld [vmem:[%s4 + $0x50] sm:$0xff]
    %v1650 = vld [vmem:[%s4 + $0x58] sm:$0xff]
    %v1651 = vld [vmem:[%s4 + $0x60] sm:$0xff]
    %v1652 = vld [vmem:[%s4 + $0x68] sm:$0xff]
    %v1653 = vld [vmem:[%s4 + $0x70] sm:$0xff]
    %v1654 = vld [vmem:[%s4 + $0x78] sm:$0xff]
    %1655 = vmatpush.msra.mxu0 %v1654
    %1656 = vmatpush.msra.mxu0 %v1653
    %1657 = vmatpush.msra.mxu0 %v1652
    %1658 = vmatpush.msra.mxu0 %v1651
    %1659 = vmatpush.msra.mxu0 %v1650
    %1660 = vmatpush.msra.mxu0 %v1649
    %1661 = vmatpush.msra.mxu0 %v1648
    %1662 = vmatpush.msra.mxu0 %v1647
    %1663 = vmatpush.msra.mxu0 %v1646
    %1664 = vmatpush.msra.mxu0 %v1645
    %1665 = vmatpush.msra.mxu0 %v1644
    %1666 = vmatpush.msra.mxu0 %v1643
    %1667 = vmatpush.msra.mxu0 %v1642
    %1668 = vmatpush.msra.mxu0 %v1641
    %1669 = vmatpush.msra.mxu0 %v1640
    %1670 = vmatpush.msra.mxu0 %v1639
    %1671 = vmatmul.f32.gmra.mxu0 %v1631
    %v1672 = vpop.f32.mrf.mxu0
    %v1673 = vadd.f32 0.0, %v1672
    %1674 = vmatmul.f32.gmra.mxu0 %v1632
    %v1675 = vpop.f32.mrf.mxu0
    %v1676 = vadd.f32 0.0, %v1675
    %1677 = vmatmul.f32.gmra.mxu0 %v1633
    %v1678 = vpop.f32.mrf.mxu0
    %v1679 = vadd.f32 0.0, %v1678
    %1680 = vmatmul.f32.gmra.mxu0 %v1634
    %v1681 = vpop.f32.mrf.mxu0
    %v1682 = vadd.f32 0.0, %v1681
    %1683 = vmatmul.f32.gmra.mxu0 %v1635
    %v1684 = vpop.f32.mrf.mxu0
    %v1685 = vadd.f32 0.0, %v1684
    %1686 = vmatmul.f32.gmra.mxu0 %v1636
    %v1687 = vpop.f32.mrf.mxu0
    %v1688 = vadd.f32 0.0, %v1687
    %1689 = vmatmul.f32.gmra.mxu0 %v1637
    %v1690 = vpop.f32.mrf.mxu0
    %v1691 = vadd.f32 0.0, %v1690
    %1692 = vmatmul.f32.gmra.mxu0 %v1638
    %v1693 = vpop.f32.mrf.mxu0
    %v1694 = vadd.f32 0.0, %v1693
    %1695 = vdwg.mxu0
    %v1696 = vld [vmem:[#allocation4] sm:$0xff]
    %v1697 = vld [vmem:[#allocation4 + $0x8] sm:$0xff]
    %v1698 = vld [vmem:[#allocation4 + $0x10] sm:$0xff]
    %v1699 = vld [vmem:[#allocation4 + $0x18] sm:$0xff]
    %v1700 = vld [vmem:[#allocation4 + $0x20] sm:$0xff]
    %v1701 = vld [vmem:[#allocation4 + $0x28] sm:$0xff]
    %v1702 = vld [vmem:[#allocation4 + $0x30] sm:$0xff]
    %v1703 = vld [vmem:[#allocation4 + $0x38] sm:$0xff]
    %v1704 = vld [vmem:[%s4] sm:$0xff]
    %v1705 = vld [vmem:[%s4 + $0x8] sm:$0xff]
    %v1706 = vld [vmem:[%s4 + $0x10] sm:$0xff]
    %v1707 = vld [vmem:[%s4 + $0x18] sm:$0xff]
    %v1708 = vld [vmem:[%s4 + $0x20] sm:$0xff]
    %v1709 = vld [vmem:[%s4 + $0x28] sm:$0xff]
    %v1710 = vld [vmem:[%s4 + $0x30] sm:$0xff]
    %v1711 = vld [vmem:[%s4 + $0x38] sm:$0xff]
    %v1712 = vld [vmem:[%s4 + $0x40] sm:$0xff]
    %v1713 = vld [vmem:[%s4 + $0x48] sm:$0xff]
    %v1714 = vld [vmem:[%s4 + $0x50] sm:$0xff]
    %v1715 = vld [vmem:[%s4 + $0x58] sm:$0xff]
    %v1716 = vld [vmem:[%s4 + $0x60] sm:$0xff]
    %v1717 = vld [vmem:[%s4 + $0x68] sm:$0xff]
    %v1718 = vld [vmem:[%s4 + $0x70] sm:$0xff]
    %v1719 = vld [vmem:[%s4 + $0x78] sm:$0xff]
    %1720 = vmatpush.msra.mxu0 %v1719
    %1721 = vmatpush.msra.mxu0 %v1718
    %1722 = vmatpush.msra.mxu0 %v1717
    %1723 = vmatpush.msra.mxu0 %v1716
    %1724 = vmatpush.msra.mxu0 %v1715
    %1725 = vmatpush.msra.mxu0 %v1714
    %1726 = vmatpush.msra.mxu0 %v1713
    %1727 = vmatpush.msra.mxu0 %v1712
    %1728 = vmatpush.msra.mxu0 %v1711
    %1729 = vmatpush.msra.mxu0 %v1710
    %1730 = vmatpush.msra.mxu0 %v1709
    %1731 = vmatpush.msra.mxu0 %v1708
    %1732 = vmatpush.msra.mxu0 %v1707
    %1733 = vmatpush.msra.mxu0 %v1706
    %1734 = vmatpush.msra.mxu0 %v1705
    %1735 = vmatpush.msra.mxu0 %v1704
    %1736 = vmatmul.f32.gmra.mxu0 %v1696
    %v1737 = vpop.f32.mrf.mxu0
    %v1738 = vadd.f32 0.0, %v1737
    %1739 = vmatmul.f32.gmra.mxu0 %v1697
    %v1740 = vpop.f32.mrf.mxu0
    %v1741 = vadd.f32 0.0, %v1740
    %1742 = vmatmul.f32.gmra.mxu0 %v1698
    %v1743 = vpop.f32.mrf.mxu0
    %v1744 = vadd.f32 0.0, %v1743
    %1745 = vmatmul.f32.gmra.mxu0 %v1699
    %v1746 = vpop.f32.mrf.mxu0
    %v1747 = vadd.f32 0.0, %v1746
    %1748 = vmatmul.f32.gmra.mxu0 %v1700
    %v1749 = vpop.f32.mrf.mxu0
    %v1750 = vadd.f32 0.0, %v1749
    %1751 = vmatmul.f32.gmra.mxu0 %v1701
    %v1752 = vpop.f32.mrf.mxu0
    %v1753 = vadd.f32 0.0, %v1752
    %1754 = vmatmul.f32.gmra.mxu0 %v1702
    %v1755 = vpop.f32.mrf.mxu0
    %v1756 = vadd.f32 0.0, %v1755
    %1757 = vmatmul.f32.gmra.mxu0 %v1703
    %v1758 = vpop.f32.mrf.mxu0
    %v1759 = vadd.f32 0.0, %v1758
    %1760 = vdwg.mxu0
    %1769 = vrot.lane.b32.xlu0 %v1738, 127
    %v1770 = vpop.permute.xlu0 %1769
    %1771 = vrot.lane.b32.xlu0 %v1741, 127
    %v1772 = vpop.permute.xlu0 %1771
    %1773 = vrot.lane.b32.xlu0 %v1744, 127
    %v1774 = vpop.permute.xlu0 %1773
    %1775 = vrot.lane.b32.xlu0 %v1747, 127
    %v1776 = vpop.permute.xlu0 %1775
    %1777 = vrot.lane.b32.xlu0 %v1750, 127
    %v1778 = vpop.permute.xlu0 %1777
    %1779 = vrot.lane.b32.xlu0 %v1753, 127
    %v1780 = vpop.permute.xlu0 %1779
    %1781 = vrot.lane.b32.xlu0 %v1756, 127
    %v1782 = vpop.permute.xlu0 %1781
    %1783 = vrot.lane.b32.xlu0 %v1759, 127
    %v1784 = vpop.permute.xlu0 %1783
    %v1793 = vadd.f32 %v1673, %v1770
    %v1794 = vadd.f32 %v1676, %v1772
    %v1795 = vadd.f32 %v1679, %v1774
    %v1796 = vadd.f32 %v1682, %v1776
    %v1797 = vadd.f32 %v1685, %v1778
    %v1798 = vadd.f32 %v1688, %v1780
    %v1799 = vadd.f32 %v1691, %v1782
    %v1800 = vadd.f32 %v1694, %v1784
    %v1801 = vld [vmem:[#allocation5] sm:$0x1]
    %s1802 = vtos %v1801
    %v1803 = vstv %s1802
    %v1804 = vadd.f32 %v1793, %v1803
    %v1805 = vadd.f32 %v1794, %v1803
    %v1806 = vadd.f32 %v1795, %v1803
    %v1807 = vadd.f32 %v1796, %v1803
    %v1808 = vadd.f32 %v1797, %v1803
    %v1809 = vadd.f32 %v1798, %v1803
    %v1810 = vadd.f32 %v1799, %v1803
    %v1811 = vadd.f32 %v1800, %v1803
    %1820 = vset.pattern.permute.xlu0 0
    %1821 = vperm.xlu0 %1820, %v1804
    %v1822 = vpop.permute.xlu0 %1821
    %1823 = vset.pattern.permute.xlu0 0
    %1824 = vperm.xlu0 %1823, %v1805
    %v1825 = vpop.permute.xlu0 %1824
    %1826 = vset.pattern.permute.xlu0 0
    %1827 = vperm.xlu0 %1826, %v1806
    %v1828 = vpop.permute.xlu0 %1827
    %1829 = vset.pattern.permute.xlu0 0
    %1830 = vperm.xlu0 %1829, %v1807
    %v1831 = vpop.permute.xlu0 %1830
    %1832 = vset.pattern.permute.xlu0 0
    %1833 = vperm.xlu0 %1832, %v1808
    %v1834 = vpop.permute.xlu0 %1833
    %1835 = vset.pattern.permute.xlu0 0
    %1836 = vperm.xlu0 %1835, %v1809
    %v1837 = vpop.permute.xlu0 %1836
    %1838 = vset.pattern.permute.xlu0 0
    %1839 = vperm.xlu0 %1838, %v1810
    %v1840 = vpop.permute.xlu0 %1839
    %1841 = vset.pattern.permute.xlu0 0
    %1842 = vperm.xlu0 %1841, %v1811
    %v1843 = vpop.permute.xlu0 %1842
    %v1844 = vlaneseq
    %v1845 = vand.u32 %v1844, 127
    %v1846 = vperm.slane %v1822, %v1845
    %v1847 = vperm.slane %v1825, %v1845
    %v1848 = vperm.slane %v1828, %v1845
    %v1849 = vperm.slane %v1831, %v1845
    %v1850 = vperm.slane %v1834, %v1845
    %v1851 = vperm.slane %v1837, %v1845
    %v1852 = vperm.slane %v1840, %v1845
    %v1853 = vperm.slane %v1843, %v1845
    %vm1854 = vcmask 1041409
    %v1855 = vsel %vm1854, %v1847, %v1846
    %vm1856 = vcmask 1042434
    %v1857 = vsel %vm1856, %v1848, %v1855
    %vm1858 = vcmask 1043459
    %v1859 = vsel %vm1858, %v1849, %v1857
    %vm1860 = vcmask 1044484
    %v1861 = vsel %vm1860, %v1850, %v1859
    %vm1862 = vcmask 1045509
    %v1863 = vsel %vm1862, %v1851, %v1861
    %vm1864 = vcmask 1046534
    %v1865 = vsel %vm1864, %v1852, %v1863
    %vm1866 = vcmask 1047559
    %v1867 = vsel %vm1866, %v1853, %v1865
    %vm1869 = vcmask 64512
    %1870 = vst.msk [vmem:[#allocation11] sm:$0xff] %vm1869, %v1867
    // Predicated region
    $region34: #{tpu_custom_call.1} parent=1 // pred_check
      _
    $region35: #{tpu_custom_call.1} parent=1 // pred_check_branch
      %1872 = sbr.rel (0) target = $region37
    $region36: #{tpu_custom_call.1} parent=1 // pred_region
      %1874 = vsyncadd [#allocation8], 0
      %s1876 = sshll.u32 [#allocation11], 4
      %s1877 = int_to_ptr.vmem [resolvable:$true] %s1876
      %s1878 = sshll.u32 %s6, 4
      %s1879 = int_to_ptr.hbm [resolvable:$true] %s1878
      %1881 = dma.vmem_to_hbm [thread:$0]  %s1877, 128, %s1879, [#allocation8]
    $region37: #{tpu_custom_call.1} parent=1 // pred_fallthru
      _
    // Predicated region
    $region38: #{tpu_custom_call.1} parent=1 // pred_check
      _
    $region39: #{tpu_custom_call.1} parent=1 // pred_check_branch
      %1883 = sbr.rel (0) target = $region41
    $region40: #{tpu_custom_call.1} parent=1 // pred_region
      %1885 = dma.done [#allocation8], 128
    $region41: #{tpu_custom_call.1} parent=1 // pred_fallthru
      _
    %1886 = vsyncpa [#allocation7], 1
    %1887 = vsyncpa [#allocation10], 1
    %1888 = vsyncpa [#allocation8], 1

</llo_original>
